<compile_context>
chip_gen: v5e
topology: v5e:2x2
jax: 0.10.0
libtpu: 0.0.40
codegen_flags: <defaults>
</compile_context>

<pallas_src>
import functools

import jax
import jax.numpy as jnp
import numpy as np
from jax.experimental import pallas as pl
from jax.experimental.pallas import tpu as pltpu


def _round_up(x, m):
    return ((x + m - 1) // m) * m


def _vmem_limit_bytes():
    # 48 MiB is above the scoped default on every generation and below v7x's
    # 64 MiB physical VMEM; clamp further if the hardware reports less.
    cap = 48 * 1024 * 1024
    try:
        phys = getattr(pltpu.get_tpu_info(), "vmem_capacity_bytes", None)
        if phys:
            cap = int(min(cap, phys * 3 // 4))
    except Exception:
        pass
    return cap


# ----------------------------------------------------------------------------
# Pallas kernel: one (node tile, edge block) work item.
# ----------------------------------------------------------------------------
def _gnn_layer_kernel(nd_ref, bk_ref, fi_ref, la_ref, wk_ref,      # scalar prefetch
                      hs_ref, hr_ref, ridx_ref, obj_ref,           # edge-tile inputs
                      ws_ref, wr_ref, qattn_ref, walpha_ref, wh_ref,  # weights
                      out_ref, acc_ref):
    g = pl.program_id(0)

    @pl.when(fi_ref[g] == 1)          # first work item of this node tile
    def _():
        acc_ref[...] = jnp.zeros_like(acc_ref)

    @pl.when(wk_ref[g] == 1)          # work item actually covers edges
    def _():
        cdt = hs_ref.dtype
        TN = acc_ref.shape[0]
        Bq = qattn_ref.shape[0]
        hs = hs_ref[...]                                            # [TE, Dp]
        hr = hr_ref[...]                                            # [TE, Dp]

        # Select the per-batch query-relation attention row (hq@Wqr + b_qr)
        # for every edge via a one-hot matmul over edges[:,0] (replaces the
        # old per-edge Wqr matmul at identical MXU cost, no [E,D] h_qr array).
        r1h = (ridx_ref[...] ==
               jax.lax.broadcasted_iota(jnp.int32, (1, Bq), 1)).astype(cdt)

        pre = (jnp.dot(hs, ws_ref[...], preferred_element_type=jnp.float32)
               + jnp.dot(hr, wr_ref[...], preferred_element_type=jnp.float32)
               + jnp.dot(r1h, qattn_ref[...],
                         preferred_element_type=jnp.float32))
        attn = jnp.maximum(pre, 0.0)                                # [TE, Ap] f32

        # alpha = sigmoid(attn @ w_alpha + b_alpha); the bias rides in the
        # spare constant-1 column (index A) of qattn / w_alpha.
        # TODO(synk): on v6e/v7x this lane reduce may be worth moving to the
        #             MXU (zero-padded column matmul) if a bundle dump shows
        #             the XLU binding.
        alpha = jax.nn.sigmoid(
            jnp.sum(attn * walpha_ref[...], axis=-1, keepdims=True))  # [TE,1]

        # message = alpha * (hs + hr); scatter-add into this node tile through
        # a lane-dense one-hot matmul. Node ids are a [TN,1] iota column
        # broadcast against the [1,TE] obj row (no [TN,TE] iota materialized).
        msg = alpha.astype(cdt) * (hs + hr)                         # [TE, Dp]
        row_base = nd_ref[g] * TN
        node_ids = row_base + jax.lax.broadcasted_iota(jnp.int32, (TN, 1), 0)
        one_hot = (node_ids == obj_ref[...]).astype(cdt)            # [TN, TE]
        acc_ref[...] += jnp.dot(one_hot, msg,
                                preferred_element_type=jnp.float32)

    @pl.when(la_ref[g] == 1)          # last work item of this node tile
    def _():
        out_ref[...] = jnp.dot(acc_ref[...].astype(wh_ref.dtype), wh_ref[...],
                               preferred_element_type=jnp.float32
                               ).astype(out_ref.dtype)


# ----------------------------------------------------------------------------
# Wrapper: XLA glue (sort, gathers, padding, work-list) + pallas_call.
# ----------------------------------------------------------------------------
@functools.partial(
    jax.jit,
    static_argnames=("out_dim", "compute_dtype", "edge_tile", "node_tile"))
def gnn_layer_forward(q_sub, q_rel, hidden, edges, nodes, params, *,
                      out_dim, compute_dtype=jnp.bfloat16,
                      edge_tile=1024, node_tile=512):
    E = edges.shape[0]
    n_node = nodes.shape[0]
    D = hidden.shape[1]
    A = params["Ws_attn"].shape[1]
    B = q_sub.shape[0]

    # ---- sort edges by destination node (makes the scatter block-local) ----
    obj = edges[:, 5].astype(jnp.int32)
    order = jnp.argsort(obj)
    es = edges[order]
    sub_s = es[:, 4]
    obj_s = es[:, 5].astype(jnp.int32)
    r_s = es[:, 0].astype(jnp.int32)

    # Embedding gathers stay in XLA (see TODO at top of file).
    hs = hidden[sub_s]                                                 # [E, D]
    hr = params["emb_ent"][es[:, 1]] + params["emb_rel"][es[:, 2]]     # [E, D]
    # Query-relation attention rows, computed once per batch element.
    hq = params["emb_ent"][q_sub] + params["emb_rel"][q_rel]           # [B, D]
    qattn = hq @ params["Wqr_attn"] + params["b_qr"]                   # [B, A]

    # ---- padding / tiling ----------------------------------------------------
    Dp = _round_up(D, 128)
    Ap = _round_up(A + 1, 128)        # +1 spare column carries b_alpha
    Op = _round_up(out_dim, 128)
    Bp = _round_up(B, 128)

    TE = _round_up(min(edge_tile, _round_up(E, 128)), 128)
    E_pad = _round_up(E, TE)
    E_blocks = E_pad // TE

    TN = _round_up(min(node_tile, _round_up(n_node, 8)), 8)
    N_pad = _round_up(n_node, TN)
    n_tiles = N_pad // TN

    def pad2(a, r, c):
        return jnp.pad(a, ((0, r - a.shape[0]), (0, c - a.shape[1])))

    hs_p = pad2(hs, E_pad, Dp).astype(compute_dtype)
    hr_p = pad2(hr, E_pad, Dp).astype(compute_dtype)
    ridx_p = jnp.pad(r_s, (0, E_pad - E)).reshape(E_pad, 1)
    # obj padded with N_pad so padded edges never hit any node row.
    obj_p = jnp.pad(obj_s, (0, E_pad - E),
                    constant_values=N_pad).reshape(1, E_pad)

    ws_p = pad2(params["Ws_attn"], Dp, Ap).astype(compute_dtype)
    wr_p = pad2(params["Wr_attn"], Dp, Ap).astype(compute_dtype)
    # qattn table with a constant-1 bias column at index A; w_alpha's entry A
    # is set to b_alpha so the alpha bias is added for free inside the reduce.
    qattn_p = pad2(qattn, Bp, Ap).at[:, A].set(1.0).astype(compute_dtype)
    walpha_p = pad2(params["w_alpha"].reshape(1, -1), 1, Ap
                    ).at[0, A].set(params["b_alpha"][0]).astype(jnp.float32)
    wh_p = pad2(params["W_h"], Dp, Op).astype(compute_dtype)

    # ---- per-node-tile edge ranges and flattened work list -------------------
    tile_starts = jnp.arange(n_tiles + 1, dtype=jnp.int32) * TN
    bounds = jnp.searchsorted(obj_s, tile_starts).astype(jnp.int32)
    start_e, end_e = bounds[:-1], bounds[1:]
    sb = start_e // TE                                   # first edge block
    nb = jnp.where(end_e > start_e, (end_e - 1) // TE - sb + 1, 0)

    items = jnp.maximum(nb, 1)        # empty node tiles still emit their zeros
    offs = jnp.concatenate(
        [jnp.zeros((1,), jnp.int32), jnp.cumsum(items).astype(jnp.int32)])
    total = offs[-1]
    G = E_blocks + 2 * n_tiles + 1    # static upper bound on total work items
    g_idx = jnp.arange(G, dtype=jnp.int32)
    nd = jnp.clip(
        jnp.searchsorted(offs, g_idx, side="right").astype(jnp.int32) - 1,
        0, n_tiles - 1)
    j = g_idx - offs[nd]
    valid = g_idx < total
    bk = jnp.clip(sb[nd] + j, 0, E_blocks - 1).astype(jnp.int32)
    fi = (valid & (j == 0)).astype(jnp.int32)
    la = (valid & (j == items[nd] - 1)).astype(jnp.int32)
    wk = (valid & (j < nb[nd])).astype(jnp.int32)

    # ---- pallas_call ----------------------------------------------------------
    emap = lambda g, t_nd, t_bk, t_fi, t_la, t_wk: (t_bk[g], 0)   # edge tiles
    omap = lambda g, t_nd, t_bk, t_fi, t_la, t_wk: (0, t_bk[g])   # obj row
    cmap = lambda g, t_nd, t_bk, t_fi, t_la, t_wk: (0, 0)         # weights
    nmap = lambda g, t_nd, t_bk, t_fi, t_la, t_wk: (t_nd[g], 0)   # output tile

    grid_spec = pltpu.PrefetchScalarGridSpec(
        num_scalar_prefetch=5,
        grid=(G,),
        in_specs=[
            pl.BlockSpec((TE, Dp), emap),      # hs tile
            pl.BlockSpec((TE, Dp), emap),      # hr tile
            pl.BlockSpec((TE, 1), emap),       # r_idx column (edges[:,0])
            pl.BlockSpec((1, TE), omap),       # obj row (edges[:,5])
            pl.BlockSpec((Dp, Ap), cmap),      # Ws_attn
            pl.BlockSpec((Dp, Ap), cmap),      # Wr_attn
            pl.BlockSpec((Bp, Ap), cmap),      # per-batch qr attention rows
            pl.BlockSpec((1, Ap), cmap),       # w_alpha (+ b_alpha in col A)
            pl.BlockSpec((Dp, Op), cmap),      # W_h
        ],
        out_specs=pl.BlockSpec((TN, Op), nmap),
        scratch_shapes=[pltpu.VMEM((TN, Dp), jnp.float32)],
    )

    hidden_new_p = pl.pallas_call(
        _gnn_layer_kernel,
        out_shape=jax.ShapeDtypeStruct((N_pad, Op), jnp.float32),
        grid_spec=grid_spec,
        compiler_params=pltpu.CompilerParams(
            dimension_semantics=("arbitrary",),
            vmem_limit_bytes=_vmem_limit_bytes()),
    )(nd, bk, fi, la, wk,
      hs_p, hr_p, ridx_p, obj_p, ws_p, wr_p, qattn_p, walpha_p, wh_p)

    hidden_new = hidden_new_p[:n_node, :out_dim]
    return hidden_new, nodes, jnp.ones((n_node,), dtype=bool)


# ----------------------------------------------------------------------------
# Pure-JAX reference of the same forward (for correctness check).
# ----------------------------------------------------------------------------
def gnn_layer_reference(q_sub, q_rel, hidden, edges, nodes, params):
    sub, rel, obj, r_idx = edges[:, 4], edges[:, 2], edges[:, 5], edges[:, 0]
    hs = hidden[sub]
    hr = params["emb_ent"][edges[:, 1]] + params["emb_rel"][rel]
    hqr = (params["emb_ent"][q_sub] + params["emb_rel"][q_rel])[r_idx]
    pre = (hs @ params["Ws_attn"] + hr @ params["Wr_attn"]
           + hqr @ params["Wqr_attn"] + params["b_qr"])
    alpha = jax.nn.sigmoid(jax.nn.relu(pre) @ params["w_alpha"] + params["b_alpha"])
    msg = alpha * (hs + hr)
    n_node = nodes.shape[0]
    agg = jax.ops.segment_sum(msg, obj, num_segments=n_node)
    return agg @ params["W_h"]


# ----------------------------------------------------------------------------
def _make_problem(seed, batchsize, n_ent, n_rel, in_dim, attn_dim, out_dim,
                  n_node, n_edge, scale=0.1):
    key = jax.random.PRNGKey(seed)
    keys = jax.random.split(key, 16)
    # parameters stored as [in, out] = transpose of nn.Linear
    params = {
        "Ws_attn": scale * jax.random.normal(keys[0], (in_dim, attn_dim), jnp.float32),
        "Wr_attn": scale * jax.random.normal(keys[1], (in_dim, attn_dim), jnp.float32),
        "Wqr_attn": scale * jax.random.normal(keys[2], (in_dim, attn_dim), jnp.float32),
        "b_qr": scale * jax.random.normal(keys[3], (attn_dim,), jnp.float32),
        "w_alpha": scale * jax.random.normal(keys[4], (attn_dim, 1), jnp.float32),
        "b_alpha": scale * jax.random.normal(keys[5], (1,), jnp.float32),
        "W_h": scale * jax.random.normal(keys[6], (in_dim, out_dim), jnp.float32),
        # synthetic rela_embed: rela_embed(a, r) = emb_ent[a] + emb_rel[r]
        "emb_ent": scale * jax.random.normal(keys[7], (n_ent, in_dim), jnp.float32),
        "emb_rel": scale * jax.random.normal(keys[8], (2 * n_rel + 1, in_dim), jnp.float32),
    }
    hidden = jax.random.normal(keys[9], (n_node, in_dim), jnp.float32)
    q_sub = jax.random.randint(keys[10], (batchsize,), 0, n_ent, jnp.int32)
    q_rel = jax.random.randint(keys[11], (batchsize,), 0, n_rel, jnp.int32)
    ek = jax.random.split(keys[12], 6)
    edges = jnp.stack([
        jax.random.randint(ek[0], (n_edge,), 0, batchsize, jnp.int32),  # batch idx
        jax.random.randint(ek[1], (n_edge,), 0, n_ent, jnp.int32),      # rela_embed arg
        jax.random.randint(ek[2], (n_edge,), 0, n_rel, jnp.int32),      # relation
        jax.random.randint(ek[3], (n_edge,), 0, n_ent, jnp.int32),      # lhs arg (unused)
        jax.random.randint(ek[4], (n_edge,), 0, n_node, jnp.int32),     # sub
        jax.random.randint(ek[5], (n_edge,), 0, n_node, jnp.int32),     # obj
    ], axis=1)
    nodes = jnp.stack([
        jax.random.randint(keys[13], (n_node,), 0, batchsize, jnp.int32),
        jax.random.randint(keys[14], (n_node,), 0, n_ent, jnp.int32),
    ], axis=1)
    return params, hidden, q_sub, q_rel, edges, nodes


if __name__ == "__main__":
    in_dim = attn_dim = out_dim = 32

    # ---- small problem (module's toy sizes) ---------------------------------
    params, hidden, q_sub, q_rel, edges, nodes = _make_problem(
        0, batchsize=2, n_ent=16, n_rel=5, in_dim=in_dim, attn_dim=attn_dim,
        out_dim=out_dim, n_node=16, n_edge=32)
    ref = gnn_layer_reference(q_sub, q_rel, hidden, edges, nodes, params)

    out_f32, new_nodes, keep_mask = gnn_layer_forward(
        q_sub, q_rel, hidden, edges, nodes, params,
        out_dim=out_dim, compute_dtype=jnp.float32)
    out_f32 = jax.block_until_ready(out_f32)
    np.testing.assert_allclose(np.asarray(out_f32), np.asarray(ref),
                               rtol=1e-4, atol=1e-5)

    out_bf16, _, _ = gnn_layer_forward(
        q_sub, q_rel, hidden, edges, nodes, params,
        out_dim=out_dim, compute_dtype=jnp.bfloat16)
    out_bf16 = jax.block_until_ready(out_bf16)
    np.testing.assert_allclose(np.asarray(out_bf16), np.asarray(ref),
                               rtol=2e-2, atol=2e-2)
    assert new_nodes.shape == nodes.shape and keep_mask.shape == (nodes.shape[0],)

    # ---- larger problem: multiple node tiles / edge blocks, exercises the
    #      sorted work-list scatter path --------------------------------------
    params2, hidden2, q_sub2, q_rel2, edges2, nodes2 = _make_problem(
        1, batchsize=4, n_ent=64, n_rel=7, in_dim=in_dim, attn_dim=attn_dim,
        out_dim=out_dim, n_node=200, n_edge=1000)
    ref2 = gnn_layer_reference(q_sub2, q_rel2, hidden2, edges2, nodes2, params2)
    out2, _, _ = gnn_layer_forward(
        q_sub2, q_rel2, hidden2, edges2, nodes2, params2,
        out_dim=out_dim, compute_dtype=jnp.float32,
        edge_tile=128, node_tile=64)
    out2 = jax.block_until_ready(out2)
    np.testing.assert_allclose(np.asarray(out2), np.asarray(ref2),
                               rtol=1e-3, atol=1e-3)

    print("KERNEL_OK")
</pallas_src>

<mosaic_0001>
module attributes {stable_mosaic.version = 11 : i64} {
  func.func @_gnn_layer_kernel(%arg0: i32, %arg1: memref<4xi32, #tpu.memory_space<smem>>, %arg2: memref<4xi32, #tpu.memory_space<smem>>, %arg3: memref<4xi32, #tpu.memory_space<smem>>, %arg4: memref<4xi32, #tpu.memory_space<smem>>, %arg5: memref<4xi32, #tpu.memory_space<smem>>, %arg6: memref<128x128xf32, #tpu.memory_space<vmem>>, %arg7: memref<128x128xf32, #tpu.memory_space<vmem>>, %arg8: memref<128x1xi32, #tpu.memory_space<vmem>>, %arg9: memref<1x128xi32, #tpu.memory_space<vmem>>, %arg10: memref<128x128xf32, #tpu.memory_space<vmem>>, %arg11: memref<128x128xf32, #tpu.memory_space<vmem>>, %arg12: memref<128x128xf32, #tpu.memory_space<vmem>>, %arg13: memref<1x128xf32, #tpu.memory_space<vmem>>, %arg14: memref<128x128xf32, #tpu.memory_space<vmem>>, %arg15: memref<16x128xf32, #tpu.memory_space<vmem>>, %arg16: memref<16x128xf32, #tpu.memory_space<vmem>>) attributes {dimension_semantics = [#tpu.dimension_semantics<arbitrary>], iteration_bounds = array<i64: 4>, scalar_prefetch = 5 : i64, scratch_operands = 1 : i64, tpu.core_type = #tpu.core_type<tc>, window_params = [{transform_indices = @transform_0, window_bounds = array<i64: 128, 128>}, {transform_indices = @transform_1, window_bounds = array<i64: 128, 128>}, {transform_indices = @transform_2, window_bounds = array<i64: 128, 1>}, {transform_indices = @transform_3, window_bounds = array<i64: 1, 128>}, {pipeline_mode = #tpu.pipeline_mode<synchronous>, transform_indices = @transform_4, window_bounds = array<i64: 128, 128>}, {pipeline_mode = #tpu.pipeline_mode<synchronous>, transform_indices = @transform_5, window_bounds = array<i64: 128, 128>}, {pipeline_mode = #tpu.pipeline_mode<synchronous>, transform_indices = @transform_6, window_bounds = array<i64: 128, 128>}, {pipeline_mode = #tpu.pipeline_mode<synchronous>, transform_indices = @transform_7, window_bounds = array<i64: 1, 128>}, {pipeline_mode = #tpu.pipeline_mode<synchronous>, transform_indices = @transform_8, window_bounds = array<i64: 128, 128>}, {transform_indices = @transform_9, window_bounds = array<i64: 16, 128>}]} {
    %0 = arith.index_cast %arg0 : i32 to index
    %1 = memref.load %arg3[%0] : memref<4xi32, #tpu.memory_space<smem>>
    %c1_i32 = arith.constant 1 : i32
    %2 = arith.cmpi eq, %1, %c1_i32 : i32
    %3 = arith.extui %2 : i1 to i32
    %c0_i32 = arith.constant 0 : i32
    %4 = arith.cmpi ne, %3, %c0_i32 : i32
    scf.if %4 {
      %cst = arith.constant 0.000000e+00 : f32
      %15 = vector.broadcast %cst : f32 to vector<16x128xf32>
      %c0 = arith.constant 0 : index
      %c0_4 = arith.constant 0 : index
      %16 = vector.load %arg16[%c0, %c0_4] : memref<16x128xf32, #tpu.memory_space<vmem>>, vector<16x128xf32>
      tpu.vector_store %arg16[%c0, %c0_4], %15 {strides = array<i32>} : memref<16x128xf32, #tpu.memory_space<vmem>>, vector<16x128xf32>,
    } else {
    }
    %5 = arith.index_cast %arg0 : i32 to index
    %6 = memref.load %arg5[%5] : memref<4xi32, #tpu.memory_space<smem>>
    %c1_i32_0 = arith.constant 1 : i32
    %7 = arith.cmpi eq, %6, %c1_i32_0 : i32
    %8 = arith.extui %7 : i1 to i32
    %c0_i32_1 = arith.constant 0 : i32
    %9 = arith.cmpi ne, %8, %c0_i32_1 : i32
    scf.if %9 {
      %c0 = arith.constant 0 : index
      %c0_4 = arith.constant 0 : index
      %15 = vector.load %arg6[%c0, %c0_4] : memref<128x128xf32, #tpu.memory_space<vmem>>, vector<128x128xf32>
      %c0_5 = arith.constant 0 : index
      %c0_6 = arith.constant 0 : index
      %16 = vector.load %arg7[%c0_5, %c0_6] : memref<128x128xf32, #tpu.memory_space<vmem>>, vector<128x128xf32>
      %c0_7 = arith.constant 0 : index
      %c0_8 = arith.constant 0 : index
      %17 = vector.load %arg8[%c0_7, %c0_8] : memref<128x1xi32, #tpu.memory_space<vmem>>, vector<128x1xi32>
      %18 = tpu.iota {dimensions = array<i32: 1>} : vector<1x128xi32>
      %19 = vector.broadcast %17 : vector<128x1xi32> to vector<128x128xi32>
      %20 = vector.broadcast %18 : vector<1x128xi32> to vector<128x128xi32>
      %21 = arith.cmpi eq, %19, %20 : vector<128x128xi32>
      %22 = arith.extui %21 : vector<128x128xi1> to vector<128x128xi32>
      %23 = arith.sitofp %22 : vector<128x128xi32> to vector<128x128xf32>
      %c0_9 = arith.constant 0 : index
      %c0_10 = arith.constant 0 : index
      %24 = vector.load %arg10[%c0_9, %c0_10] : memref<128x128xf32, #tpu.memory_space<vmem>>, vector<128x128xf32>
      %cst = arith.constant dense<0.000000e+00> : vector<128x128xf32>
      %25 = tpu.matmul %15, %24, %cst {dimension_numbers = #tpu.dot_dimension_numbers<[1], [0], [0], [1], [0, 0, 1, 1], [], []>} : vector<128x128xf32>, vector<128x128xf32>, vector<128x128xf32> -> vector<128x128xf32>
      %c0_11 = arith.constant 0 : index
      %c0_12 = arith.constant 0 : index
      %26 = vector.load %arg11[%c0_11, %c0_12] : memref<128x128xf32, #tpu.memory_space<vmem>>, vector<128x128xf32>
      %cst_13 = arith.constant dense<0.000000e+00> : vector<128x128xf32>
      %27 = tpu.matmul %16, %26, %cst_13 {dimension_numbers = #tpu.dot_dimension_numbers<[1], [0], [0], [1], [0, 0, 1, 1], [], []>} : vector<128x128xf32>, vector<128x128xf32>, vector<128x128xf32> -> vector<128x128xf32>
      %28 = arith.addf %25, %27 : vector<128x128xf32>
      %c0_14 = arith.constant 0 : index
      %c0_15 = arith.constant 0 : index
      %29 = vector.load %arg12[%c0_14, %c0_15] : memref<128x128xf32, #tpu.memory_space<vmem>>, vector<128x128xf32>
      %cst_16 = arith.constant dense<0.000000e+00> : vector<128x128xf32>
      %30 = tpu.matmul %23, %29, %cst_16 {dimension_numbers = #tpu.dot_dimension_numbers<[1], [0], [0], [1], [0, 0, 1, 1], [], []>} : vector<128x128xf32>, vector<128x128xf32>, vector<128x128xf32> -> vector<128x128xf32>
      %31 = arith.addf %28, %30 : vector<128x128xf32>
      %cst_17 = arith.constant 0.000000e+00 : f32
      %32 = vector.broadcast %cst_17 : f32 to vector<128x128xf32>
      %33 = arith.maximumf %31, %32 : vector<128x128xf32>
      %c0_18 = arith.constant 0 : index
      %c0_19 = arith.constant 0 : index
      %34 = vector.load %arg13[%c0_18, %c0_19] : memref<1x128xf32, #tpu.memory_space<vmem>>, vector<1x128xf32>
      %35 = vector.broadcast %34 : vector<1x128xf32> to vector<128x128xf32>
      %36 = arith.mulf %33, %35 : vector<128x128xf32>
      %cst_20 = arith.constant dense<0.000000e+00> : vector<128xf32>
      %37 = vector.multi_reduction <add>, %36, %cst_20 [1] : vector<128x128xf32> to vector<128xf32>
      %38 = vector.shape_cast %37 : vector<128xf32> to vector<128x1xf32>
      %39 = arith.negf %38 : vector<128x1xf32>
      %40 = math.exp %39 : vector<128x1xf32>
      %cst_21 = arith.constant 1.000000e+00 : f32
      %41 = vector.broadcast %cst_21 : f32 to vector<128x1xf32>
      %42 = arith.addf %41, %40 : vector<128x1xf32>
      %43 = arith.divf %41, %42 : vector<128x1xf32>
      %44 = arith.addf %15, %16 : vector<128x128xf32>
      %45 = vector.broadcast %43 : vector<128x1xf32> to vector<128x128xf32>
      %46 = arith.mulf %45, %44 : vector<128x128xf32>
      %47 = arith.index_cast %arg0 : i32 to index
      %48 = memref.load %arg1[%47] : memref<4xi32, #tpu.memory_space<smem>>
      %c16_i32 = arith.constant 16 : i32
      %49 = arith.muli %48, %c16_i32 : i32
      %50 = tpu.iota {dimensions = array<i32: 0>} : vector<16x1xi32>
      %51 = vector.broadcast %49 : i32 to vector<16x1xi32>
      %52 = arith.addi %51, %50 : vector<16x1xi32>
      %c0_22 = arith.constant 0 : index
      %c0_23 = arith.constant 0 : index
      %53 = vector.load %arg9[%c0_22, %c0_23] : memref<1x128xi32, #tpu.memory_space<vmem>>, vector<1x128xi32>
      %54 = vector.broadcast %52 : vector<16x1xi32> to vector<16x128xi32>
      %55 = vector.broadcast %53 : vector<1x128xi32> to vector<16x128xi32>
      %56 = arith.cmpi eq, %54, %55 : vector<16x128xi32>
      %57 = arith.extui %56 : vector<16x128xi1> to vector<16x128xi32>
      %58 = arith.sitofp %57 : vector<16x128xi32> to vector<16x128xf32>
      %c0_24 = arith.constant 0 : index
      %c0_25 = arith.constant 0 : index
      %59 = vector.load %arg16[%c0_24, %c0_25] : memref<16x128xf32, #tpu.memory_space<vmem>>, vector<16x128xf32>
      %cst_26 = arith.constant dense<0.000000e+00> : vector<16x128xf32>
      %60 = tpu.matmul %58, %46, %cst_26 {dimension_numbers = #tpu.dot_dimension_numbers<[1], [0], [0], [1], [0, 0, 1, 1], [], []>} : vector<16x128xf32>, vector<128x128xf32>, vector<16x128xf32> -> vector<16x128xf32>
      %61 = arith.addf %59, %60 : vector<16x128xf32>
      %c0_27 = arith.constant 0 : index
      %c0_28 = arith.constant 0 : index
      %62 = vector.load %arg16[%c0_27, %c0_28] : memref<16x128xf32, #tpu.memory_space<vmem>>, vector<16x128xf32>
      tpu.vector_store %arg16[%c0_27, %c0_28], %61 {strides = array<i32>} : memref<16x128xf32, #tpu.memory_space<vmem>>, vector<16x128xf32>,
    } else {
    }
    %10 = arith.index_cast %arg0 : i32 to index
    %11 = memref.load %arg4[%10] : memref<4xi32, #tpu.memory_space<smem>>
    %c1_i32_2 = arith.constant 1 : i32
    %12 = arith.cmpi eq, %11, %c1_i32_2 : i32
    %13 = arith.extui %12 : i1 to i32
    %c0_i32_3 = arith.constant 0 : i32
    %14 = arith.cmpi ne, %13, %c0_i32_3 : i32
    scf.if %14 {
      %c0 = arith.constant 0 : index
      %c0_4 = arith.constant 0 : index
      %15 = vector.load %arg16[%c0, %c0_4] : memref<16x128xf32, #tpu.memory_space<vmem>>, vector<16x128xf32>
      %c0_5 = arith.constant 0 : index
      %c0_6 = arith.constant 0 : index
      %16 = vector.load %arg14[%c0_5, %c0_6] : memref<128x128xf32, #tpu.memory_space<vmem>>, vector<128x128xf32>
      %cst = arith.constant dense<0.000000e+00> : vector<16x128xf32>
      %17 = tpu.matmul %15, %16, %cst {dimension_numbers = #tpu.dot_dimension_numbers<[1], [0], [0], [1], [0, 0, 1, 1], [], []>} : vector<16x128xf32>, vector<128x128xf32>, vector<16x128xf32> -> vector<16x128xf32>
      %c0_7 = arith.constant 0 : index
      %c0_8 = arith.constant 0 : index
      %18 = vector.load %arg15[%c0_7, %c0_8] : memref<16x128xf32, #tpu.memory_space<vmem>>, vector<16x128xf32>
      tpu.vector_store %arg15[%c0_7, %c0_8], %17 {strides = array<i32>} : memref<16x128xf32, #tpu.memory_space<vmem>>, vector<16x128xf32>,
    } else {
    }
    return
  }
  func.func @transform_0(%arg0: i32, %arg1: memref<4xi32, #tpu.memory_space<smem>>, %arg2: memref<4xi32, #tpu.memory_space<smem>>, %arg3: memref<4xi32, #tpu.memory_space<smem>>, %arg4: memref<4xi32, #tpu.memory_space<smem>>, %arg5: memref<4xi32, #tpu.memory_space<smem>>) -> (i32, i32) {
    %0 = arith.index_cast %arg0 : i32 to index
    %1 = memref.load %arg2[%0] : memref<4xi32, #tpu.memory_space<smem>>
    %c0_i32 = arith.constant 0 : i32
    %c0_i32_0 = arith.constant 0 : i32
    return %1, %c0_i32 : i32, i32
  }
  func.func @transform_1(%arg0: i32, %arg1: memref<4xi32, #tpu.memory_space<smem>>, %arg2: memref<4xi32, #tpu.memory_space<smem>>, %arg3: memref<4xi32, #tpu.memory_space<smem>>, %arg4: memref<4xi32, #tpu.memory_space<smem>>, %arg5: memref<4xi32, #tpu.memory_space<smem>>) -> (i32, i32) {
    %0 = arith.index_cast %arg0 : i32 to index
    %1 = memref.load %arg2[%0] : memref<4xi32, #tpu.memory_space<smem>>
    %c0_i32 = arith.constant 0 : i32
    %c0_i32_0 = arith.constant 0 : i32
    return %1, %c0_i32 : i32, i32
  }
  func.func @transform_2(%arg0: i32, %arg1: memref<4xi32, #tpu.memory_space<smem>>, %arg2: memref<4xi32, #tpu.memory_space<smem>>, %arg3: memref<4xi32, #tpu.memory_space<smem>>, %arg4: memref<4xi32, #tpu.memory_space<smem>>, %arg5: memref<4xi32, #tpu.memory_space<smem>>) -> (i32, i32) {
    %0 = arith.index_cast %arg0 : i32 to index
    %1 = memref.load %arg2[%0] : memref<4xi32, #tpu.memory_space<smem>>
    %c0_i32 = arith.constant 0 : i32
    %c0_i32_0 = arith.constant 0 : i32
    return %1, %c0_i32 : i32, i32
  }
  func.func @transform_3(%arg0: i32, %arg1: memref<4xi32, #tpu.memory_space<smem>>, %arg2: memref<4xi32, #tpu.memory_space<smem>>, %arg3: memref<4xi32, #tpu.memory_space<smem>>, %arg4: memref<4xi32, #tpu.memory_space<smem>>, %arg5: memref<4xi32, #tpu.memory_space<smem>>) -> (i32, i32) {
    %0 = arith.index_cast %arg0 : i32 to index
    %1 = memref.load %arg2[%0] : memref<4xi32, #tpu.memory_space<smem>>
    %c0_i32 = arith.constant 0 : i32
    %c0_i32_0 = arith.constant 0 : i32
    return %c0_i32, %1 : i32, i32
  }
  func.func @transform_4(%arg0: i32, %arg1: memref<4xi32, #tpu.memory_space<smem>>, %arg2: memref<4xi32, #tpu.memory_space<smem>>, %arg3: memref<4xi32, #tpu.memory_space<smem>>, %arg4: memref<4xi32, #tpu.memory_space<smem>>, %arg5: memref<4xi32, #tpu.memory_space<smem>>) -> (i32, i32) {
    %c0_i32 = arith.constant 0 : i32
    %c0_i32_0 = arith.constant 0 : i32
    %c0_i32_1 = arith.constant 0 : i32
    return %c0_i32, %c0_i32_0 : i32, i32
  }
  func.func @transform_5(%arg0: i32, %arg1: memref<4xi32, #tpu.memory_space<smem>>, %arg2: memref<4xi32, #tpu.memory_space<smem>>, %arg3: memref<4xi32, #tpu.memory_space<smem>>, %arg4: memref<4xi32, #tpu.memory_space<smem>>, %arg5: memref<4xi32, #tpu.memory_space<smem>>) -> (i32, i32) {
    %c0_i32 = arith.constant 0 : i32
    %c0_i32_0 = arith.constant 0 : i32
    %c0_i32_1 = arith.constant 0 : i32
    return %c0_i32, %c0_i32_0 : i32, i32
  }
  func.func @transform_6(%arg0: i32, %arg1: memref<4xi32, #tpu.memory_space<smem>>, %arg2: memref<4xi32, #tpu.memory_space<smem>>, %arg3: memref<4xi32, #tpu.memory_space<smem>>, %arg4: memref<4xi32, #tpu.memory_space<smem>>, %arg5: memref<4xi32, #tpu.memory_space<smem>>) -> (i32, i32) {
    %c0_i32 = arith.constant 0 : i32
    %c0_i32_0 = arith.constant 0 : i32
    %c0_i32_1 = arith.constant 0 : i32
    return %c0_i32, %c0_i32_0 : i32, i32
  }
  func.func @transform_7(%arg0: i32, %arg1: memref<4xi32, #tpu.memory_space<smem>>, %arg2: memref<4xi32, #tpu.memory_space<smem>>, %arg3: memref<4xi32, #tpu.memory_space<smem>>, %arg4: memref<4xi32, #tpu.memory_space<smem>>, %arg5: memref<4xi32, #tpu.memory_space<smem>>) -> (i32, i32) {
    %c0_i32 = arith.constant 0 : i32
    %c0_i32_0 = arith.constant 0 : i32
    %c0_i32_1 = arith.constant 0 : i32
    return %c0_i32, %c0_i32_0 : i32, i32
  }
  func.func @transform_8(%arg0: i32, %arg1: memref<4xi32, #tpu.memory_space<smem>>, %arg2: memref<4xi32, #tpu.memory_space<smem>>, %arg3: memref<4xi32, #tpu.memory_space<smem>>, %arg4: memref<4xi32, #tpu.memory_space<smem>>, %arg5: memref<4xi32, #tpu.memory_space<smem>>) -> (i32, i32) {
    %c0_i32 = arith.constant 0 : i32
    %c0_i32_0 = arith.constant 0 : i32
    %c0_i32_1 = arith.constant 0 : i32
    return %c0_i32, %c0_i32_0 : i32, i32
  }
  func.func @transform_9(%arg0: i32, %arg1: memref<4xi32, #tpu.memory_space<smem>>, %arg2: memref<4xi32, #tpu.memory_space<smem>>, %arg3: memref<4xi32, #tpu.memory_space<smem>>, %arg4: memref<4xi32, #tpu.memory_space<smem>>, %arg5: memref<4xi32, #tpu.memory_space<smem>>) -> (i32, i32) {
    %0 = arith.index_cast %arg0 : i32 to index
    %1 = memref.load %arg1[%0] : memref<4xi32, #tpu.memory_space<smem>>
    %c0_i32 = arith.constant 0 : i32
    %c0_i32_0 = arith.constant 0 : i32
    return %1, %c0_i32 : i32, i32
  }
}

</mosaic_0001>

<llo_original>
// kernel: custom-call
$region0: #{custom-call}
  %s0 = inlined_call_operand.vmem [shape: u32[2], index: 0, kind: output, shape index: {}]

// kernel: custom-call.2
$region0: #{custom-call.2}
  %s0 = inlined_call_operand.vmem [shape: u32[4], index: 0, kind: output, shape index: {}]

// kernel: gnn_layer_forward.1
$region0: #{gnn_layer_forward.1}
  #allocation0 [shape = 'u32[]', space=smem, size = 0x4, offset = 0x4, fixed_abs, tag = 'smem constant byte address 0x4 - core index']
  #allocation1 [shape = 'u32[72,128]{1,0:T(1,128)}', space=vmem, size = 0x9000, scoped, tag = 'internal scratch']
  #allocation2 [shape = 'f32[16,128]{1,0:T(8,128)}', space=vmem, size = 0x2000, scoped, tag = 'scratch operand']
  #allocation3 [shape = 's32[1]{0}', space=sflag, size = 0x4, scoped, tag = 'scoped memory for gnn_layer_forward.1']
  #allocation4 [shape = 'u8[512]{0}', space=smem, size = 0x200, scoped, tag = 'prefetched SMEM operand 0']
  #allocation5 [shape = 'u8[512]{0}', space=smem, size = 0x200, scoped, tag = 'prefetched SMEM operand 1']
  #allocation6 [shape = 'u8[512]{0}', space=smem, size = 0x200, scoped, tag = 'prefetched SMEM operand 2']
  #allocation7 [shape = 'u8[512]{0}', space=smem, size = 0x200, scoped, tag = 'prefetched SMEM operand 3']
  #allocation8 [shape = 'u8[512]{0}', space=smem, size = 0x200, scoped, tag = 'prefetched SMEM operand 4']
  %s0 = inlined_call_operand.vmem [shape: s32[4], index: 0, kind: input, shape index: {}]
  %s1 = inlined_call_operand.vmem [shape: s32[4], index: 1, kind: input, shape index: {}]
  %s2 = inlined_call_operand.vmem [shape: s32[4], index: 2, kind: input, shape index: {}]
  %s3 = inlined_call_operand.vmem [shape: s32[4], index: 3, kind: input, shape index: {}]
  %s4 = inlined_call_operand.vmem [shape: s32[4], index: 4, kind: input, shape index: {}]
  %s5 = inlined_call_operand.vmem [shape: f32[128,128], index: 5, kind: input, shape index: {}]
  %s6 = inlined_call_operand.vmem [shape: f32[128,128], index: 6, kind: input, shape index: {}]
  %s7 = inlined_call_operand.vmem [shape: s32[128,1], index: 7, kind: input, shape index: {}]
  %s8 = inlined_call_operand.vmem [shape: s32[1,128], index: 8, kind: input, shape index: {}]
  %s9 = inlined_call_operand.vmem [shape: f32[128,128], index: 9, kind: input, shape index: {}]
  %s10 = inlined_call_operand.vmem [shape: f32[128,128], index: 10, kind: input, shape index: {}]
  %s11 = inlined_call_operand.vmem [shape: f32[128,128], index: 11, kind: input, shape index: {}]
  %s12 = inlined_call_operand.vmem [shape: f32[1,128], index: 12, kind: input, shape index: {}]
  %s13 = inlined_call_operand.vmem [shape: f32[128,128], index: 13, kind: input, shape index: {}]
  %s14 = inlined_call_operand.hbm [shape: f32[16,128], index: 14, kind: output, shape index: {}]
  %s15 = sld [smem:[#allocation0]]
  $region81: #{gnn_layer_forward.1} parent=0
    _
  %s17 = ssub.s32 1, %s15
  %s18 = scalar_select 0, %s17, %s15
  %s20 = sshll.u32 %s0, 4
  %s21 = int_to_ptr.vmem [resolvable:$true] %s20
  %23 = dma.vmem_to_smem %s21, 16, [#allocation4], [#allocation3]
  %s25 = sshll.u32 %s1, 4
  %s26 = int_to_ptr.vmem [resolvable:$true] %s25
  %28 = dma.vmem_to_smem %s26, 16, [#allocation5], [#allocation3]
  %s30 = sshll.u32 %s2, 4
  %s31 = int_to_ptr.vmem [resolvable:$true] %s30
  %33 = dma.vmem_to_smem %s31, 16, [#allocation6], [#allocation3]
  %s35 = sshll.u32 %s3, 4
  %s36 = int_to_ptr.vmem [resolvable:$true] %s35
  %38 = dma.vmem_to_smem %s36, 16, [#allocation7], [#allocation3]
  %s40 = sshll.u32 %s4, 4
  %s41 = int_to_ptr.vmem [resolvable:$true] %s40
  %43 = dma.vmem_to_smem %s41, 16, [#allocation8], [#allocation3]
  %45 = dma.done [#allocation3], 80
  %46 = sfence
  $region1: #{gnn_layer_forward.1} parent=0
    #allocation9 [shape = 'u8[16384]{0}', space=vmem, size = 0x4000, scoped, tag = 'output window, operand 0']
    #allocation10 [shape = 's32[2]{0}', space=sflag, size = 0x8, scoped, tag = 'scoped memory for gnn_layer_forward.1']
    %47 = vsyncpa [#allocation10], 0
    %s48 = scalar_lea.sflag [#allocation10], 1
    %49 = vsyncpa %s48, 0
    loop: start=0, step=1, limit=6
    $region2: #{gnn_layer_forward.1} parent=1 // loop_pre_header
      _
    $region3: #{gnn_layer_forward.1} parent=1 // loop_header
      %s51 = sphi 0, %s55
      %p52 = scmp.ge.s32.totalorder %s51, 6
      %s63 = sphi 0, %s65
      %s66 = sphi 0, %s63
      %s67 = sphi 0, %s66
      %s83 = sphi 0, %s67
      %s91 = sphi 0, %s93
      %s94 = sphi 0, %s91
      %s95 = sphi 0, %s94
      %s111 = sphi 0, %s95
      %s119 = sphi 0, %s121
      %s122 = sphi 0, %s119
      %s123 = sphi 0, %s122
      %s139 = sphi 0, %s123
      %s147 = sphi 0, %s149
      %s150 = sphi 0, %s147
      %s151 = sphi 0, %s150
      %s167 = sphi 0, %s151
      %s171 = sphi 0, %s171
      %s173 = sphi 0, %s171
      %s174 = sphi 0, %s173
      %s188 = sphi 0, %s174
      %s192 = sphi 0, %s192
      %s194 = sphi 0, %s192
      %s195 = sphi 0, %s194
      %s209 = sphi 0, %s195
      %s213 = sphi 0, %s213
      %s215 = sphi 0, %s213
      %s216 = sphi 0, %s215
      %s230 = sphi 0, %s216
      %s234 = sphi 0, %s234
      %s236 = sphi 0, %s234
      %s237 = sphi 0, %s236
      %s251 = sphi 0, %s237
      %s255 = sphi 0, %s255
      %s257 = sphi 0, %s255
      %s258 = sphi 0, %s257
      %s272 = sphi 0, %s258
      %s280 = sphi 0, %s282
      %s283 = sphi 0, %s280
      %s284 = sphi 0, %s283
      %s300 = sphi 0, %s284
    $region4: #{gnn_layer_forward.1} parent=1 // loop_header_branch
      %54 = sbr.rel (%p52) target = $region8
    $region5: #{gnn_layer_forward.1} parent=1 // loop_body
      %s56 = ssub.s32 %s51, 1
      %s57 = ssub.s32 %s51, 2
      %s58 = sadd.s32 %s51, 1
      %s59 = sld [smem:[#allocation5 + %s51]]
      %s60 = sld [smem:[#allocation5 + %s58]]
      %s61 = ssub.s32 %s59, %s60
      %p62 = scmp.eq.s32.totalorder %s61, 0
      %s64 = sadd.s32 %s63, 1
      %s65 = scalar_select %p62, %s63, %s64
      %p68 = pneg %p62
      %p69 = scmp.eq.s32.totalorder %s51, 3
      %p70 = por %p68, %p69
      %p71 = scmp.ne.s32.totalorder %s63, %s66
      %p72 = scmp.eq.s32.totalorder %s51, 0
      %p73 = por %p71, %p72
      %p74 = scmp.ne.s32.totalorder %s63, %s66
      %p75 = scmp.eq.s32.totalorder %s56, 3
      %p76 = por %p74, %p75
      %p77 = scmp.ne.s32.totalorder %s66, %s67
      %p78 = scmp.eq.s32.totalorder %s56, 0
      %p79 = por %p77, %p78
      %p80 = scmp.ne.s32.totalorder %s66, %s67
      %p81 = scmp.eq.s32.totalorder %s57, 3
      %p82 = por %p80, %p81
      %p84 = scmp.ne.s32.totalorder %s67, %s83
      %p85 = scmp.eq.s32.totalorder %s57, 0
      %p86 = por %p84, %p85
      %s87 = sld [smem:[#allocation5 + %s51]]
      %s88 = sld [smem:[#allocation5 + %s58]]
      %s89 = ssub.s32 %s87, %s88
      %p90 = scmp.eq.s32.totalorder %s89, 0
      %s92 = sadd.s32 %s91, 1
      %s93 = scalar_select %p90, %s91, %s92
      %p96 = pneg %p90
      %p97 = scmp.eq.s32.totalorder %s51, 3
      %p98 = por %p96, %p97
      %p99 = scmp.ne.s32.totalorder %s91, %s94
      %p100 = scmp.eq.s32.totalorder %s51, 0
      %p101 = por %p99, %p100
      %p102 = scmp.ne.s32.totalorder %s91, %s94
      %p103 = scmp.eq.s32.totalorder %s56, 3
      %p104 = por %p102, %p103
      %p105 = scmp.ne.s32.totalorder %s94, %s95
      %p106 = scmp.eq.s32.totalorder %s56, 0
      %p107 = por %p105, %p106
      %p108 = scmp.ne.s32.totalorder %s94, %s95
      %p109 = scmp.eq.s32.totalorder %s57, 3
      %p110 = por %p108, %p109
      %p112 = scmp.ne.s32.totalorder %s95, %s111
      %p113 = scmp.eq.s32.totalorder %s57, 0
      %p114 = por %p112, %p113
      %s115 = sld [smem:[#allocation5 + %s51]]
      %s116 = sld [smem:[#allocation5 + %s58]]
      %s117 = ssub.s32 %s115, %s116
      %p118 = scmp.eq.s32.totalorder %s117, 0
      %s120 = sadd.s32 %s119, 1
      %s121 = scalar_select %p118, %s119, %s120
      %p124 = pneg %p118
      %p125 = scmp.eq.s32.totalorder %s51, 3
      %p126 = por %p124, %p125
      %p127 = scmp.ne.s32.totalorder %s119, %s122
      %p128 = scmp.eq.s32.totalorder %s51, 0
      %p129 = por %p127, %p128
      %p130 = scmp.ne.s32.totalorder %s119, %s122
      %p131 = scmp.eq.s32.totalorder %s56, 3
      %p132 = por %p130, %p131
      %p133 = scmp.ne.s32.totalorder %s122, %s123
      %p134 = scmp.eq.s32.totalorder %s56, 0
      %p135 = por %p133, %p134
      %p136 = scmp.ne.s32.totalorder %s122, %s123
      %p137 = scmp.eq.s32.totalorder %s57, 3
      %p138 = por %p136, %p137
      %p140 = scmp.ne.s32.totalorder %s123, %s139
      %p141 = scmp.eq.s32.totalorder %s57, 0
      %p142 = por %p140, %p141
      %s143 = sld [smem:[#allocation5 + %s51]]
      %s144 = sld [smem:[#allocation5 + %s58]]
      %s145 = ssub.s32 %s143, %s144
      %p146 = scmp.eq.s32.totalorder %s145, 0
      %s148 = sadd.s32 %s147, 1
      %s149 = scalar_select %p146, %s147, %s148
      %p152 = pneg %p146
      %p153 = scmp.eq.s32.totalorder %s51, 3
      %p154 = por %p152, %p153
      %p155 = scmp.ne.s32.totalorder %s147, %s150
      %p156 = scmp.eq.s32.totalorder %s51, 0
      %p157 = por %p155, %p156
      %p158 = scmp.ne.s32.totalorder %s147, %s150
      %p159 = scmp.eq.s32.totalorder %s56, 3
      %p160 = por %p158, %p159
      %p161 = scmp.ne.s32.totalorder %s150, %s151
      %p162 = scmp.eq.s32.totalorder %s56, 0
      %p163 = por %p161, %p162
      %p164 = scmp.ne.s32.totalorder %s150, %s151
      %p165 = scmp.eq.s32.totalorder %s57, 3
      %p166 = por %p164, %p165
      %p168 = scmp.ne.s32.totalorder %s151, %s167
      %p169 = scmp.eq.s32.totalorder %s57, 0
      %p170 = por %p168, %p169
      %s172 = sadd.s32 %s171, 1
      %p175 = scmp.eq.s32.totalorder %s51, 3
      %p176 = scmp.ne.s32.totalorder %s171, %s173
      %p177 = scmp.eq.s32.totalorder %s51, 0
      %p178 = por %p176, %p177
      %p179 = scmp.ne.s32.totalorder %s171, %s173
      %p180 = scmp.eq.s32.totalorder %s56, 3
      %p181 = por %p179, %p180
      %p182 = scmp.ne.s32.totalorder %s173, %s174
      %p183 = scmp.eq.s32.totalorder %s56, 0
      %p184 = por %p182, %p183
      %p185 = scmp.ne.s32.totalorder %s173, %s174
      %p186 = scmp.eq.s32.totalorder %s57, 3
      %p187 = por %p185, %p186
      %p189 = scmp.ne.s32.totalorder %s174, %s188
      %p190 = scmp.eq.s32.totalorder %s57, 0
      %p191 = por %p189, %p190
      %s193 = sadd.s32 %s192, 1
      %p196 = scmp.eq.s32.totalorder %s51, 3
      %p197 = scmp.ne.s32.totalorder %s192, %s194
      %p198 = scmp.eq.s32.totalorder %s51, 0
      %p199 = por %p197, %p198
      %p200 = scmp.ne.s32.totalorder %s192, %s194
      %p201 = scmp.eq.s32.totalorder %s56, 3
      %p202 = por %p200, %p201
      %p203 = scmp.ne.s32.totalorder %s194, %s195
      %p204 = scmp.eq.s32.totalorder %s56, 0
      %p205 = por %p203, %p204
      %p206 = scmp.ne.s32.totalorder %s194, %s195
      %p207 = scmp.eq.s32.totalorder %s57, 3
      %p208 = por %p206, %p207
      %p210 = scmp.ne.s32.totalorder %s195, %s209
      %p211 = scmp.eq.s32.totalorder %s57, 0
      %p212 = por %p210, %p211
      %s214 = sadd.s32 %s213, 1
      %p217 = scmp.eq.s32.totalorder %s51, 3
      %p218 = scmp.ne.s32.totalorder %s213, %s215
      %p219 = scmp.eq.s32.totalorder %s51, 0
      %p220 = por %p218, %p219
      %p221 = scmp.ne.s32.totalorder %s213, %s215
      %p222 = scmp.eq.s32.totalorder %s56, 3
      %p223 = por %p221, %p222
      %p224 = scmp.ne.s32.totalorder %s215, %s216
      %p225 = scmp.eq.s32.totalorder %s56, 0
      %p226 = por %p224, %p225
      %p227 = scmp.ne.s32.totalorder %s215, %s216
      %p228 = scmp.eq.s32.totalorder %s57, 3
      %p229 = por %p227, %p228
      %p231 = scmp.ne.s32.totalorder %s216, %s230
      %p232 = scmp.eq.s32.totalorder %s57, 0
      %p233 = por %p231, %p232
      %s235 = sadd.s32 %s234, 1
      %p238 = scmp.eq.s32.totalorder %s51, 3
      %p239 = scmp.ne.s32.totalorder %s234, %s236
      %p240 = scmp.eq.s32.totalorder %s51, 0
      %p241 = por %p239, %p240
      %p242 = scmp.ne.s32.totalorder %s234, %s236
      %p243 = scmp.eq.s32.totalorder %s56, 3
      %p244 = por %p242, %p243
      %p245 = scmp.ne.s32.totalorder %s236, %s237
      %p246 = scmp.eq.s32.totalorder %s56, 0
      %p247 = por %p245, %p246
      %p248 = scmp.ne.s32.totalorder %s236, %s237
      %p249 = scmp.eq.s32.totalorder %s57, 3
      %p250 = por %p248, %p249
      %p252 = scmp.ne.s32.totalorder %s237, %s251
      %p253 = scmp.eq.s32.totalorder %s57, 0
      %p254 = por %p252, %p253
      %s256 = sadd.s32 %s255, 1
      %p259 = scmp.eq.s32.totalorder %s51, 3
      %p260 = scmp.ne.s32.totalorder %s255, %s257
      %p261 = scmp.eq.s32.totalorder %s51, 0
      %p262 = por %p260, %p261
      %p263 = scmp.ne.s32.totalorder %s255, %s257
      %p264 = scmp.eq.s32.totalorder %s56, 3
      %p265 = por %p263, %p264
      %p266 = scmp.ne.s32.totalorder %s257, %s258
      %p267 = scmp.eq.s32.totalorder %s56, 0
      %p268 = por %p266, %p267
      %p269 = scmp.ne.s32.totalorder %s257, %s258
      %p270 = scmp.eq.s32.totalorder %s57, 3
      %p271 = por %p269, %p270
      %p273 = scmp.ne.s32.totalorder %s258, %s272
      %p274 = scmp.eq.s32.totalorder %s57, 0
      %p275 = por %p273, %p274
      %s276 = sld [smem:[#allocation4 + %s51]]
      %s277 = sld [smem:[#allocation4 + %s58]]
      %s278 = ssub.s32 %s276, %s277
      %p279 = scmp.eq.s32.totalorder %s278, 0
      %s281 = sadd.s32 %s280, 1
      %s282 = scalar_select %p279, %s280, %s281
      %p285 = pneg %p279
      %p286 = scmp.eq.s32.totalorder %s51, 3
      %p287 = por %p285, %p286
      %p288 = scmp.ne.s32.totalorder %s280, %s283
      %p289 = scmp.eq.s32.totalorder %s51, 0
      %p290 = por %p288, %p289
      %p291 = scmp.ne.s32.totalorder %s280, %s283
      %p292 = scmp.eq.s32.totalorder %s56, 3
      %p293 = por %p291, %p292
      %p294 = scmp.ne.s32.totalorder %s283, %s284
      %p295 = scmp.eq.s32.totalorder %s56, 0
      %p296 = por %p294, %p295
      %p297 = scmp.ne.s32.totalorder %s283, %s284
      %p298 = scmp.eq.s32.totalorder %s57, 3
      %p299 = por %p297, %p298
      %p301 = scmp.ne.s32.totalorder %s284, %s300
      %p302 = scmp.eq.s32.totalorder %s57, 0
      %p303 = por %p301, %p302
      %p304 = scmp.le.s32.totalorder 1, %s51
      %p305 = scmp.lt.s32.totalorder %s51, 5
      %p306 = pnand %p304, %p305
      %p307 = pneg %p306
      // Predicated region
      $region9: #{gnn_layer_forward.1} parent=5 // pred_check
        _
      $region10: #{gnn_layer_forward.1} parent=5 // pred_check_branch
        %309 = sbr.rel (%p306) target = $region12
      $region11: #{gnn_layer_forward.1} parent=5 // pred_region
        %s310 = ssub.s32 %s51, 1
        // Predicated region
        $region13: #{gnn_layer_forward.1} parent=11 // pred_check
          %p311 = pneg %p184
        $region14: #{gnn_layer_forward.1} parent=11 // pred_check_branch
          %313 = sbr.rel (%p311) target = $region16
        $region15: #{gnn_layer_forward.1} parent=11 // pred_region
          _
        $region16: #{gnn_layer_forward.1} parent=11 // pred_fallthru
          _
        // Predicated region
        $region17: #{gnn_layer_forward.1} parent=11 // pred_check
          %p314 = pneg %p205
        $region18: #{gnn_layer_forward.1} parent=11 // pred_check_branch
          %316 = sbr.rel (%p314) target = $region20
        $region19: #{gnn_layer_forward.1} parent=11 // pred_region
          _
        $region20: #{gnn_layer_forward.1} parent=11 // pred_fallthru
          _
        // Predicated region
        $region21: #{gnn_layer_forward.1} parent=11 // pred_check
          %p317 = pneg %p226
        $region22: #{gnn_layer_forward.1} parent=11 // pred_check_branch
          %319 = sbr.rel (%p317) target = $region24
        $region23: #{gnn_layer_forward.1} parent=11 // pred_region
          _
        $region24: #{gnn_layer_forward.1} parent=11 // pred_fallthru
          _
        // Predicated region
        $region25: #{gnn_layer_forward.1} parent=11 // pred_check
          %p320 = pneg %p247
        $region26: #{gnn_layer_forward.1} parent=11 // pred_check_branch
          %322 = sbr.rel (%p320) target = $region28
        $region27: #{gnn_layer_forward.1} parent=11 // pred_region
          _
        $region28: #{gnn_layer_forward.1} parent=11 // pred_fallthru
          _
        // Predicated region
        $region29: #{gnn_layer_forward.1} parent=11 // pred_check
          %p323 = pneg %p268
        $region30: #{gnn_layer_forward.1} parent=11 // pred_check_branch
          %325 = sbr.rel (%p323) target = $region32
        $region31: #{gnn_layer_forward.1} parent=11 // pred_region
          _
        $region32: #{gnn_layer_forward.1} parent=11 // pred_fallthru
          _
      $region12: #{gnn_layer_forward.1} parent=5 // pred_fallthru
        _
      %p326 = scmp.lt.s32.totalorder %s51, 4
      // Predicated region
      $region33: #{gnn_layer_forward.1} parent=5 // pred_check
        %p327 = pneg %p326
      $region34: #{gnn_layer_forward.1} parent=5 // pred_check_branch
        %329 = sbr.rel (%p327) target = $region36
      $region35: #{gnn_layer_forward.1} parent=5 // pred_region
        // Predicated region
        $region37: #{gnn_layer_forward.1} parent=35 // pred_check
          %p330 = pneg %p73
        $region38: #{gnn_layer_forward.1} parent=35 // pred_check_branch
          %332 = sbr.rel (%p330) target = $region40
        $region39: #{gnn_layer_forward.1} parent=35 // pred_region
          %s333 = sld [smem:[#allocation5 + %s51]]
          %s334 = smul.u32 16, %s333
          %p335 = scmp.lt.s32.totalorder %s334, 15
          %s336 = scalar_select %p335, %s334, 15
          %s337 = smul.addr %s336, 8
          %s338 = scalar_lea.vmem %s5, %s337
          %s339 = sld [smem:[#allocation5 + %s51]]
          %s340 = smul.u32 16, %s339
        $region40: #{gnn_layer_forward.1} parent=35 // pred_fallthru
          _
        // Predicated region
        $region41: #{gnn_layer_forward.1} parent=35 // pred_check
          %p341 = pneg %p101
        $region42: #{gnn_layer_forward.1} parent=35 // pred_check_branch
          %343 = sbr.rel (%p341) target = $region44
        $region43: #{gnn_layer_forward.1} parent=35 // pred_region
          %s344 = sld [smem:[#allocation5 + %s51]]
          %s345 = smul.u32 16, %s344
          %p346 = scmp.lt.s32.totalorder %s345, 15
          %s347 = scalar_select %p346, %s345, 15
          %s348 = smul.addr %s347, 8
          %s349 = scalar_lea.vmem %s6, %s348
          %s350 = sld [smem:[#allocation5 + %s51]]
          %s351 = smul.u32 16, %s350
        $region44: #{gnn_layer_forward.1} parent=35 // pred_fallthru
          _
        // Predicated region
        $region45: #{gnn_layer_forward.1} parent=35 // pred_check
          %p352 = pneg %p129
        $region46: #{gnn_layer_forward.1} parent=35 // pred_check_branch
          %354 = sbr.rel (%p352) target = $region48
        $region47: #{gnn_layer_forward.1} parent=35 // pred_region
          %s355 = sld [smem:[#allocation5 + %s51]]
          %s356 = smul.u32 16, %s355
          %p357 = scmp.lt.s32.totalorder %s356, 15
          %s358 = scalar_select %p357, %s356, 15
          %s359 = smul.addr %s358, 8
          %s360 = scalar_lea.vmem %s7, %s359
          %s361 = sld [smem:[#allocation5 + %s51]]
          %s362 = smul.u32 16, %s361
        $region48: #{gnn_layer_forward.1} parent=35 // pred_fallthru
          _
        // Predicated region
        $region49: #{gnn_layer_forward.1} parent=35 // pred_check
          %p363 = pneg %p157
        $region50: #{gnn_layer_forward.1} parent=35 // pred_check_branch
          %365 = sbr.rel (%p363) target = $region52
        $region51: #{gnn_layer_forward.1} parent=35 // pred_region
          %s366 = sld [smem:[#allocation5 + %s51]]
          %p367 = scmp.lt.s32.totalorder %s366, 0
          %s368 = scalar_select %p367, %s366, 0
          %s369 = scalar_lea.vmem %s8, %s368
          %s370 = sld [smem:[#allocation5 + %s51]]
        $region52: #{gnn_layer_forward.1} parent=35 // pred_fallthru
          _
      $region36: #{gnn_layer_forward.1} parent=5 // pred_fallthru
        _
      %p371 = scmp.le.s32.totalorder 1, %s51
      %p372 = scmp.lt.s32.totalorder %s51, 5
      %p373 = pnand %p371, %p372
      %p374 = pneg %p373
      // Predicated region
      $region53: #{gnn_layer_forward.1} parent=5 // pred_check
        _
      $region54: #{gnn_layer_forward.1} parent=5 // pred_check_branch
        %376 = sbr.rel (%p373) target = $region56
      $region55: #{gnn_layer_forward.1} parent=5 // pred_region
        %s377 = ssub.s32 %s51, 1
        %s378 = sld [smem:[#allocation5 + %s56]]
        %s379 = smul.u32 16, %s378
        %p380 = scmp.lt.s32.totalorder %s379, 15
        %s381 = scalar_select %p380, %s379, 15
        %s382 = smul.addr %s381, 8
        %s383 = scalar_lea.vmem %s5, %s382
        %p384 = pneg %p79
        %p385 = pneg %p76
        %s386 = sld [smem:[#allocation5 + %s56]]
        %s387 = smul.u32 16, %s386
        %p388 = scmp.lt.s32.totalorder %s387, 15
        %s389 = scalar_select %p388, %s387, 15
        %s390 = smul.addr %s389, 8
        %s391 = scalar_lea.vmem %s6, %s390
        %p392 = pneg %p107
        %p393 = pneg %p104
        %s394 = sld [smem:[#allocation5 + %s56]]
        %s395 = smul.u32 16, %s394
        %p396 = scmp.lt.s32.totalorder %s395, 15
        %s397 = scalar_select %p396, %s395, 15
        %s398 = smul.addr %s397, 8
        %s399 = scalar_lea.vmem %s7, %s398
        %p400 = pneg %p135
        %p401 = pneg %p132
        %s402 = sld [smem:[#allocation5 + %s56]]
        %p403 = scmp.lt.s32.totalorder %s402, 0
        %s404 = scalar_select %p403, %s402, 0
        %s405 = scalar_lea.vmem %s8, %s404
        %p406 = pneg %p163
        %p407 = pneg %p160
        %p408 = pneg %p184
        %p409 = pneg %p181
        %p410 = pneg %p205
        %p411 = pneg %p202
        %p412 = pneg %p226
        %p413 = pneg %p223
        %p414 = pneg %p247
        %p415 = pneg %p244
        %p416 = pneg %p268
        %p417 = pneg %p265
        %p418 = pneg %p296
        %p419 = pneg %p293
        %s420 = sand.u32 %s283, 1
        %s421 = scalar_lea.sflag [#allocation10], %s420
        %s422 = sand.u32 %s283, 1
        %s423 = smul.addr %s422, 16
        %s424 = scalar_lea.vmem [#allocation9], %s423
        %s425 = sld [smem:[#allocation5 + %s56]]
        %s426 = smul.u32 16, %s425
        %p427 = scmp.lt.s32.totalorder %s426, 15
        %s428 = scalar_select %p427, %s426, 15
        %s429 = smul.addr %s428, 8
        %s430 = scalar_lea.vmem %s5, %s429
        %s431 = sld [smem:[#allocation5 + %s56]]
        %s432 = smul.u32 16, %s431
        %s433 = sld [smem:[#allocation5 + %s56]]
        %s434 = smul.u32 16, %s433
        %p435 = scmp.lt.s32.totalorder %s434, 15
        %s436 = scalar_select %p435, %s434, 15
        %s437 = smul.addr %s436, 8
        %s438 = scalar_lea.vmem %s6, %s437
        %s439 = sld [smem:[#allocation5 + %s56]]
        %s440 = smul.u32 16, %s439
        %s441 = sld [smem:[#allocation5 + %s56]]
        %s442 = smul.u32 16, %s441
        %p443 = scmp.lt.s32.totalorder %s442, 15
        %s444 = scalar_select %p443, %s442, 15
        %s445 = smul.addr %s444, 8
        %s446 = scalar_lea.vmem %s7, %s445
        %s447 = sld [smem:[#allocation5 + %s56]]
        %s448 = smul.u32 16, %s447
        %s449 = sld [smem:[#allocation5 + %s56]]
        %p450 = scmp.lt.s32.totalorder %s449, 0
        %s451 = scalar_select %p450, %s449, 0
        %s452 = scalar_lea.vmem %s8, %s451
        %s453 = sld [smem:[#allocation5 + %s56]]
        %s454 = sld [smem:[#allocation4 + %s56]]
        %s455 = smul.u32 2, %s454
        %s456 = sld [smem:[#allocation6 + %s56]]
        %p457 = scmp.eq.s32.totalorder %s456, 1
        // Predicated region
        $region57: #{gnn_layer_forward.1} parent=55 // pred_check
          %p458 = pneg %p457
        $region58: #{gnn_layer_forward.1} parent=55 // pred_check_branch
          %460 = sbr.rel (%p458) target = $region60
        $region59: #{gnn_layer_forward.1} parent=55 // pred_region
          %461 = vst [vmem:[#allocation2] sm:$0xff] 0.0
          %462 = vst [vmem:[#allocation2 + $0x8] sm:$0xff] 0.0
        $region60: #{gnn_layer_forward.1} parent=55 // pred_fallthru
          _
        %s463 = sld [smem:[#allocation8 + %s56]]
        %p464 = scmp.eq.s32.totalorder %s463, 1
        // Predicated region
        $region61: #{gnn_layer_forward.1} parent=55 // pred_check
          %p465 = pneg %p464
        $region62: #{gnn_layer_forward.1} parent=55 // pred_check_branch
          %467 = sbr.rel (%p465) target = $region64
        $region63: #{gnn_layer_forward.1} parent=55 // pred_region
          %v468 = vld [vmem:[%s430] sm:$0xff]
          %v469 = vld [vmem:[%s430 + $0x8] sm:$0xff]
          %v470 = vld [vmem:[%s430 + $0x10] sm:$0xff]
          %v471 = vld [vmem:[%s430 + $0x18] sm:$0xff]
          %v472 = vld [vmem:[%s430 + $0x20] sm:$0xff]
          %v473 = vld [vmem:[%s430 + $0x28] sm:$0xff]
          %v474 = vld [vmem:[%s430 + $0x30] sm:$0xff]
          %v475 = vld [vmem:[%s430 + $0x38] sm:$0xff]
          %v476 = vld [vmem:[%s430 + $0x40] sm:$0xff]
          %v477 = vld [vmem:[%s430 + $0x48] sm:$0xff]
          %v478 = vld [vmem:[%s430 + $0x50] sm:$0xff]
          %v479 = vld [vmem:[%s430 + $0x58] sm:$0xff]
          %v480 = vld [vmem:[%s430 + $0x60] sm:$0xff]
          %v481 = vld [vmem:[%s430 + $0x68] sm:$0xff]
          %v482 = vld [vmem:[%s430 + $0x70] sm:$0xff]
          %v483 = vld [vmem:[%s430 + $0x78] sm:$0xff]
          %v484 = vld [vmem:[%s438] sm:$0xff]
          %v485 = vld [vmem:[%s438 + $0x8] sm:$0xff]
          %v486 = vld [vmem:[%s438 + $0x10] sm:$0xff]
          %v487 = vld [vmem:[%s438 + $0x18] sm:$0xff]
          %v488 = vld [vmem:[%s438 + $0x20] sm:$0xff]
          %v489 = vld [vmem:[%s438 + $0x28] sm:$0xff]
          %v490 = vld [vmem:[%s438 + $0x30] sm:$0xff]
          %v491 = vld [vmem:[%s438 + $0x38] sm:$0xff]
          %v492 = vld [vmem:[%s438 + $0x40] sm:$0xff]
          %v493 = vld [vmem:[%s438 + $0x48] sm:$0xff]
          %v494 = vld [vmem:[%s438 + $0x50] sm:$0xff]
          %v495 = vld [vmem:[%s438 + $0x58] sm:$0xff]
          %v496 = vld [vmem:[%s438 + $0x60] sm:$0xff]
          %v497 = vld [vmem:[%s438 + $0x68] sm:$0xff]
          %v498 = vld [vmem:[%s438 + $0x70] sm:$0xff]
          %v499 = vld [vmem:[%s438 + $0x78] sm:$0xff]
          %v500 = vld [vmem:[%s446] sm:$0xff]
          %v501 = vld [vmem:[%s446 + $0x8] sm:$0xff]
          %v502 = vld [vmem:[%s446 + $0x10] sm:$0xff]
          %v503 = vld [vmem:[%s446 + $0x18] sm:$0xff]
          %v504 = vld [vmem:[%s446 + $0x20] sm:$0xff]
          %v505 = vld [vmem:[%s446 + $0x28] sm:$0xff]
          %v506 = vld [vmem:[%s446 + $0x30] sm:$0xff]
          %v507 = vld [vmem:[%s446 + $0x38] sm:$0xff]
          %v508 = vld [vmem:[%s446 + $0x40] sm:$0xff]
          %v509 = vld [vmem:[%s446 + $0x48] sm:$0xff]
          %v510 = vld [vmem:[%s446 + $0x50] sm:$0xff]
          %v511 = vld [vmem:[%s446 + $0x58] sm:$0xff]
          %v512 = vld [vmem:[%s446 + $0x60] sm:$0xff]
          %v513 = vld [vmem:[%s446 + $0x68] sm:$0xff]
          %v514 = vld [vmem:[%s446 + $0x70] sm:$0xff]
          %v515 = vld [vmem:[%s446 + $0x78] sm:$0xff]
          %v516 = vlaneseq
          %v517 = vand.u32 %v516, 127
          %518 = vset.pattern.permute.xlu0 0
          %519 = vperm.xlu0 %518, %v500
          %v520 = vpop.permute.xlu0 %519
          %521 = vset.pattern.permute.xlu0 0
          %522 = vperm.xlu0 %521, %v501
          %v523 = vpop.permute.xlu0 %522
          %524 = vset.pattern.permute.xlu0 0
          %525 = vperm.xlu0 %524, %v502
          %v526 = vpop.permute.xlu0 %525
          %527 = vset.pattern.permute.xlu0 0
          %528 = vperm.xlu0 %527, %v503
          %v529 = vpop.permute.xlu0 %528
          %530 = vset.pattern.permute.xlu0 0
          %531 = vperm.xlu0 %530, %v504
          %v532 = vpop.permute.xlu0 %531
          %533 = vset.pattern.permute.xlu0 0
          %534 = vperm.xlu0 %533, %v505
          %v535 = vpop.permute.xlu0 %534
          %536 = vset.pattern.permute.xlu0 0
          %537 = vperm.xlu0 %536, %v506
          %v538 = vpop.permute.xlu0 %537
          %539 = vset.pattern.permute.xlu0 0
          %540 = vperm.xlu0 %539, %v507
          %v541 = vpop.permute.xlu0 %540
          %542 = vset.pattern.permute.xlu0 0
          %543 = vperm.xlu0 %542, %v508
          %v544 = vpop.permute.xlu0 %543
          %545 = vset.pattern.permute.xlu0 0
          %546 = vperm.xlu0 %545, %v509
          %v547 = vpop.permute.xlu0 %546
          %548 = vset.pattern.permute.xlu0 0
          %549 = vperm.xlu0 %548, %v510
          %v550 = vpop.permute.xlu0 %549
          %551 = vset.pattern.permute.xlu0 0
          %552 = vperm.xlu0 %551, %v511
          %v553 = vpop.permute.xlu0 %552
          %554 = vset.pattern.permute.xlu0 0
          %555 = vperm.xlu0 %554, %v512
          %v556 = vpop.permute.xlu0 %555
          %557 = vset.pattern.permute.xlu0 0
          %558 = vperm.xlu0 %557, %v513
          %v559 = vpop.permute.xlu0 %558
          %560 = vset.pattern.permute.xlu0 0
          %561 = vperm.xlu0 %560, %v514
          %v562 = vpop.permute.xlu0 %561
          %563 = vset.pattern.permute.xlu0 0
          %564 = vperm.xlu0 %563, %v515
          %v565 = vpop.permute.xlu0 %564
          %vm566 = vcmp.eq.s32.totalorder %v520, %v517
          %vm567 = vcmp.eq.s32.totalorder %v523, %v517
          %vm568 = vcmp.eq.s32.totalorder %v526, %v517
          %vm569 = vcmp.eq.s32.totalorder %v529, %v517
          %vm570 = vcmp.eq.s32.totalorder %v532, %v517
          %vm571 = vcmp.eq.s32.totalorder %v535, %v517
          %vm572 = vcmp.eq.s32.totalorder %v538, %v517
          %vm573 = vcmp.eq.s32.totalorder %v541, %v517
          %vm574 = vcmp.eq.s32.totalorder %v544, %v517
          %vm575 = vcmp.eq.s32.totalorder %v547, %v517
          %vm576 = vcmp.eq.s32.totalorder %v550, %v517
          %vm577 = vcmp.eq.s32.totalorder %v553, %v517
          %vm578 = vcmp.eq.s32.totalorder %v556, %v517
          %vm579 = vcmp.eq.s32.totalorder %v559, %v517
          %vm580 = vcmp.eq.s32.totalorder %v562, %v517
          %vm581 = vcmp.eq.s32.totalorder %v565, %v517
          %v582 = vsel %vm566, 1, 0
          %v583 = vsel %vm567, 1, 0
          %v584 = vsel %vm568, 1, 0
          %v585 = vsel %vm569, 1, 0
          %v586 = vsel %vm570, 1, 0
          %v587 = vsel %vm571, 1, 0
          %v588 = vsel %vm572, 1, 0
          %v589 = vsel %vm573, 1, 0
          %v590 = vsel %vm574, 1, 0
          %v591 = vsel %vm575, 1, 0
          %v592 = vsel %vm576, 1, 0
          %v593 = vsel %vm577, 1, 0
          %v594 = vsel %vm578, 1, 0
          %v595 = vsel %vm579, 1, 0
          %v596 = vsel %vm580, 1, 0
          %v597 = vsel %vm581, 1, 0
          %v598 = vcvt.s32.f32 %v582
          %v599 = vcvt.s32.f32 %v583
          %v600 = vcvt.s32.f32 %v584
          %v601 = vcvt.s32.f32 %v585
          %v602 = vcvt.s32.f32 %v586
          %v603 = vcvt.s32.f32 %v587
          %v604 = vcvt.s32.f32 %v588
          %v605 = vcvt.s32.f32 %v589
          %v606 = vcvt.s32.f32 %v590
          %v607 = vcvt.s32.f32 %v591
          %v608 = vcvt.s32.f32 %v592
          %v609 = vcvt.s32.f32 %v593
          %v610 = vcvt.s32.f32 %v594
          %v611 = vcvt.s32.f32 %v595
          %v612 = vcvt.s32.f32 %v596
          %v613 = vcvt.s32.f32 %v597
          %v614 = vld [vmem:[%s9] sm:$0xff]
          %v615 = vld [vmem:[%s9 + $0x8] sm:$0xff]
          %v616 = vld [vmem:[%s9 + $0x10] sm:$0xff]
          %v617 = vld [vmem:[%s9 + $0x18] sm:$0xff]
          %v618 = vld [vmem:[%s9 + $0x20] sm:$0xff]
          %v619 = vld [vmem:[%s9 + $0x28] sm:$0xff]
          %v620 = vld [vmem:[%s9 + $0x30] sm:$0xff]
          %v621 = vld [vmem:[%s9 + $0x38] sm:$0xff]
          %v622 = vld [vmem:[%s9 + $0x40] sm:$0xff]
          %v623 = vld [vmem:[%s9 + $0x48] sm:$0xff]
          %v624 = vld [vmem:[%s9 + $0x50] sm:$0xff]
          %v625 = vld [vmem:[%s9 + $0x58] sm:$0xff]
          %v626 = vld [vmem:[%s9 + $0x60] sm:$0xff]
          %v627 = vld [vmem:[%s9 + $0x68] sm:$0xff]
          %v628 = vld [vmem:[%s9 + $0x70] sm:$0xff]
          %v629 = vld [vmem:[%s9 + $0x78] sm:$0xff]
          %v630 = vld [vmem:[%s10] sm:$0xff]
          %v631 = vld [vmem:[%s10 + $0x8] sm:$0xff]
          %v632 = vld [vmem:[%s10 + $0x10] sm:$0xff]
          %v633 = vld [vmem:[%s10 + $0x18] sm:$0xff]
          %v634 = vld [vmem:[%s10 + $0x20] sm:$0xff]
          %v635 = vld [vmem:[%s10 + $0x28] sm:$0xff]
          %v636 = vld [vmem:[%s10 + $0x30] sm:$0xff]
          %v637 = vld [vmem:[%s10 + $0x38] sm:$0xff]
          %v638 = vld [vmem:[%s10 + $0x40] sm:$0xff]
          %v639 = vld [vmem:[%s10 + $0x48] sm:$0xff]
          %v640 = vld [vmem:[%s10 + $0x50] sm:$0xff]
          %v641 = vld [vmem:[%s10 + $0x58] sm:$0xff]
          %v642 = vld [vmem:[%s10 + $0x60] sm:$0xff]
          %v643 = vld [vmem:[%s10 + $0x68] sm:$0xff]
          %v644 = vld [vmem:[%s10 + $0x70] sm:$0xff]
          %v645 = vld [vmem:[%s10 + $0x78] sm:$0xff]
          %646 = vmatpush.msra.mxu0 %v645
          %647 = vmatpush.msra.mxu0 %v644
          %648 = vmatpush.msra.mxu0 %v643
          %649 = vmatpush.msra.mxu0 %v642
          %650 = vmatpush.msra.mxu0 %v641
          %651 = vmatpush.msra.mxu0 %v640
          %652 = vmatpush.msra.mxu0 %v639
          %653 = vmatpush.msra.mxu0 %v638
          %654 = vmatpush.msra.mxu0 %v637
          %655 = vmatpush.msra.mxu0 %v636
          %656 = vmatpush.msra.mxu0 %v635
          %657 = vmatpush.msra.mxu0 %v634
          %658 = vmatpush.msra.mxu0 %v633
          %659 = vmatpush.msra.mxu0 %v632
          %660 = vmatpush.msra.mxu0 %v631
          %661 = vmatpush.msra.mxu0 %v630
          %662 = vmatmul.f32.gmra.mxu0 %v484
          %v663 = vpop.f32.mrf.mxu0
          %v664 = vadd.f32 0.0, %v663
          %665 = vmatmul.f32.gmra.mxu0 %v485
          %v666 = vpop.f32.mrf.mxu0
          %v667 = vadd.f32 0.0, %v666
          %668 = vmatmul.f32.gmra.mxu0 %v486
          %v669 = vpop.f32.mrf.mxu0
          %v670 = vadd.f32 0.0, %v669
          %671 = vmatmul.f32.gmra.mxu0 %v487
          %v672 = vpop.f32.mrf.mxu0
          %v673 = vadd.f32 0.0, %v672
          %674 = vmatmul.f32.gmra.mxu0 %v488
          %v675 = vpop.f32.mrf.mxu0
          %v676 = vadd.f32 0.0, %v675
          %677 = vmatmul.f32.gmra.mxu0 %v489
          %v678 = vpop.f32.mrf.mxu0
          %v679 = vadd.f32 0.0, %v678
          %680 = vmatmul.f32.gmra.mxu0 %v490
          %v681 = vpop.f32.mrf.mxu0
          %v682 = vadd.f32 0.0, %v681
          %683 = vmatmul.f32.gmra.mxu0 %v491
          %v684 = vpop.f32.mrf.mxu0
          %v685 = vadd.f32 0.0, %v684
          %686 = vmatmul.f32.gmra.mxu0 %v492
          %v687 = vpop.f32.mrf.mxu0
          %v688 = vadd.f32 0.0, %v687
          %689 = vmatmul.f32.gmra.mxu0 %v493
          %v690 = vpop.f32.mrf.mxu0
          %v691 = vadd.f32 0.0, %v690
          %692 = vmatmul.f32.gmra.mxu0 %v494
          %v693 = vpop.f32.mrf.mxu0
          %v694 = vadd.f32 0.0, %v693
          %695 = vmatmul.f32.gmra.mxu0 %v495
          %v696 = vpop.f32.mrf.mxu0
          %v697 = vadd.f32 0.0, %v696
          %698 = vmatmul.f32.gmra.mxu0 %v496
          %v699 = vpop.f32.mrf.mxu0
          %v700 = vadd.f32 0.0, %v699
          %701 = vmatmul.f32.gmra.mxu0 %v497
          %v702 = vpop.f32.mrf.mxu0
          %v703 = vadd.f32 0.0, %v702
          %704 = vmatmul.f32.gmra.mxu0 %v498
          %v705 = vpop.f32.mrf.mxu0
          %v706 = vadd.f32 0.0, %v705
          %707 = vmatmul.f32.gmra.mxu0 %v499
          %v708 = vpop.f32.mrf.mxu0
          %v709 = vadd.f32 0.0, %v708
          %710 = vdwg.mxu0
          %711 = vmatpush.msra.mxu0 %v629
          %712 = vmatpush.msra.mxu0 %v628
          %713 = vmatpush.msra.mxu0 %v627
          %714 = vmatpush.msra.mxu0 %v626
          %715 = vmatpush.msra.mxu0 %v625
          %716 = vmatpush.msra.mxu0 %v624
          %717 = vmatpush.msra.mxu0 %v623
          %718 = vmatpush.msra.mxu0 %v622
          %719 = vmatpush.msra.mxu0 %v621
          %720 = vmatpush.msra.mxu0 %v620
          %721 = vmatpush.msra.mxu0 %v619
          %722 = vmatpush.msra.mxu0 %v618
          %723 = vmatpush.msra.mxu0 %v617
          %724 = vmatpush.msra.mxu0 %v616
          %725 = vmatpush.msra.mxu0 %v615
          %726 = vmatpush.msra.mxu0 %v614
          %727 = vmatmul.f32.gmra.mxu0 %v468
          %v728 = vpop.f32.mrf.mxu0
          %v729 = vadd.f32 %v664, %v728
          %730 = vmatmul.f32.gmra.mxu0 %v469
          %v731 = vpop.f32.mrf.mxu0
          %v732 = vadd.f32 %v667, %v731
          %733 = vmatmul.f32.gmra.mxu0 %v470
          %v734 = vpop.f32.mrf.mxu0
          %v735 = vadd.f32 %v670, %v734
          %736 = vmatmul.f32.gmra.mxu0 %v471
          %v737 = vpop.f32.mrf.mxu0
          %v738 = vadd.f32 %v673, %v737
          %739 = vmatmul.f32.gmra.mxu0 %v472
          %v740 = vpop.f32.mrf.mxu0
          %v741 = vadd.f32 %v676, %v740
          %742 = vmatmul.f32.gmra.mxu0 %v473
          %v743 = vpop.f32.mrf.mxu0
          %v744 = vadd.f32 %v679, %v743
          %745 = vmatmul.f32.gmra.mxu0 %v474
          %v746 = vpop.f32.mrf.mxu0
          %v747 = vadd.f32 %v682, %v746
          %748 = vmatmul.f32.gmra.mxu0 %v475
          %v749 = vpop.f32.mrf.mxu0
          %v750 = vadd.f32 %v685, %v749
          %751 = vmatmul.f32.gmra.mxu0 %v476
          %v752 = vpop.f32.mrf.mxu0
          %v753 = vadd.f32 %v688, %v752
          %754 = vmatmul.f32.gmra.mxu0 %v477
          %v755 = vpop.f32.mrf.mxu0
          %v756 = vadd.f32 %v691, %v755
          %757 = vmatmul.f32.gmra.mxu0 %v478
          %v758 = vpop.f32.mrf.mxu0
          %v759 = vadd.f32 %v694, %v758
          %760 = vmatmul.f32.gmra.mxu0 %v479
          %v761 = vpop.f32.mrf.mxu0
          %v762 = vadd.f32 %v697, %v761
          %763 = vmatmul.f32.gmra.mxu0 %v480
          %v764 = vpop.f32.mrf.mxu0
          %v765 = vadd.f32 %v700, %v764
          %766 = vmatmul.f32.gmra.mxu0 %v481
          %v767 = vpop.f32.mrf.mxu0
          %v768 = vadd.f32 %v703, %v767
          %769 = vmatmul.f32.gmra.mxu0 %v482
          %v770 = vpop.f32.mrf.mxu0
          %v771 = vadd.f32 %v706, %v770
          %772 = vmatmul.f32.gmra.mxu0 %v483
          %v773 = vpop.f32.mrf.mxu0
          %v774 = vadd.f32 %v709, %v773
          %775 = vdwg.mxu0
          %v776 = vld [vmem:[%s11] sm:$0xff]
          %v777 = vld [vmem:[%s11 + $0x8] sm:$0xff]
          %v778 = vld [vmem:[%s11 + $0x10] sm:$0xff]
          %v779 = vld [vmem:[%s11 + $0x18] sm:$0xff]
          %v780 = vld [vmem:[%s11 + $0x20] sm:$0xff]
          %v781 = vld [vmem:[%s11 + $0x28] sm:$0xff]
          %v782 = vld [vmem:[%s11 + $0x30] sm:$0xff]
          %v783 = vld [vmem:[%s11 + $0x38] sm:$0xff]
          %v784 = vld [vmem:[%s11 + $0x40] sm:$0xff]
          %v785 = vld [vmem:[%s11 + $0x48] sm:$0xff]
          %v786 = vld [vmem:[%s11 + $0x50] sm:$0xff]
          %v787 = vld [vmem:[%s11 + $0x58] sm:$0xff]
          %v788 = vld [vmem:[%s11 + $0x60] sm:$0xff]
          %v789 = vld [vmem:[%s11 + $0x68] sm:$0xff]
          %v790 = vld [vmem:[%s11 + $0x70] sm:$0xff]
          %v791 = vld [vmem:[%s11 + $0x78] sm:$0xff]
          %792 = vmatpush.msra.mxu0 %v791
          %793 = vmatpush.msra.mxu0 %v790
          %794 = vmatpush.msra.mxu0 %v789
          %795 = vmatpush.msra.mxu0 %v788
          %796 = vmatpush.msra.mxu0 %v787
          %797 = vmatpush.msra.mxu0 %v786
          %798 = vmatpush.msra.mxu0 %v785
          %799 = vmatpush.msra.mxu0 %v784
          %800 = vmatpush.msra.mxu0 %v783
          %801 = vmatpush.msra.mxu0 %v782
          %802 = vmatpush.msra.mxu0 %v781
          %803 = vmatpush.msra.mxu0 %v780
          %804 = vmatpush.msra.mxu0 %v779
          %805 = vmatpush.msra.mxu0 %v778
          %806 = vmatpush.msra.mxu0 %v777
          %807 = vmatpush.msra.mxu0 %v776
          %808 = vmatmul.f32.gmra.mxu0 %v598
          %v809 = vpop.f32.mrf.mxu0
          %v810 = vadd.f32 0.0, %v809
          %811 = vmatmul.f32.gmra.mxu0 %v599
          %v812 = vpop.f32.mrf.mxu0
          %v813 = vadd.f32 0.0, %v812
          %814 = vmatmul.f32.gmra.mxu0 %v600
          %v815 = vpop.f32.mrf.mxu0
          %v816 = vadd.f32 0.0, %v815
          %817 = vmatmul.f32.gmra.mxu0 %v601
          %v818 = vpop.f32.mrf.mxu0
          %v819 = vadd.f32 0.0, %v818
          %820 = vmatmul.f32.gmra.mxu0 %v602
          %v821 = vpop.f32.mrf.mxu0
          %v822 = vadd.f32 0.0, %v821
          %823 = vmatmul.f32.gmra.mxu0 %v603
          %v824 = vpop.f32.mrf.mxu0
          %v825 = vadd.f32 0.0, %v824
          %826 = vmatmul.f32.gmra.mxu0 %v604
          %v827 = vpop.f32.mrf.mxu0
          %v828 = vadd.f32 0.0, %v827
          %829 = vmatmul.f32.gmra.mxu0 %v605
          %v830 = vpop.f32.mrf.mxu0
          %v831 = vadd.f32 0.0, %v830
          %832 = vmatmul.f32.gmra.mxu0 %v606
          %v833 = vpop.f32.mrf.mxu0
          %v834 = vadd.f32 0.0, %v833
          %835 = vmatmul.f32.gmra.mxu0 %v607
          %v836 = vpop.f32.mrf.mxu0
          %v837 = vadd.f32 0.0, %v836
          %838 = vmatmul.f32.gmra.mxu0 %v608
          %v839 = vpop.f32.mrf.mxu0
          %v840 = vadd.f32 0.0, %v839
          %841 = vmatmul.f32.gmra.mxu0 %v609
          %v842 = vpop.f32.mrf.mxu0
          %v843 = vadd.f32 0.0, %v842
          %844 = vmatmul.f32.gmra.mxu0 %v610
          %v845 = vpop.f32.mrf.mxu0
          %v846 = vadd.f32 0.0, %v845
          %847 = vmatmul.f32.gmra.mxu0 %v611
          %v848 = vpop.f32.mrf.mxu0
          %v849 = vadd.f32 0.0, %v848
          %850 = vmatmul.f32.gmra.mxu0 %v612
          %v851 = vpop.f32.mrf.mxu0
          %v852 = vadd.f32 0.0, %v851
          %853 = vmatmul.f32.gmra.mxu0 %v613
          %v854 = vpop.f32.mrf.mxu0
          %v855 = vadd.f32 0.0, %v854
          %856 = vdwg.mxu0
          %v857 = vadd.f32 %v729, %v810
          %v858 = vadd.f32 %v732, %v813
          %v859 = vadd.f32 %v735, %v816
          %v860 = vadd.f32 %v738, %v819
          %v861 = vadd.f32 %v741, %v822
          %v862 = vadd.f32 %v744, %v825
          %v863 = vadd.f32 %v747, %v828
          %v864 = vadd.f32 %v750, %v831
          %v865 = vadd.f32 %v753, %v834
          %v866 = vadd.f32 %v756, %v837
          %v867 = vadd.f32 %v759, %v840
          %v868 = vadd.f32 %v762, %v843
          %v869 = vadd.f32 %v765, %v846
          %v870 = vadd.f32 %v768, %v849
          %v871 = vadd.f32 %v771, %v852
          %v872 = vadd.f32 %v774, %v855
          %v873 = vmax.f32 %v857, 0.0
          %v874 = vmax.f32 %v858, 0.0
          %v875 = vmax.f32 %v859, 0.0
          %v876 = vmax.f32 %v860, 0.0
          %v877 = vmax.f32 %v861, 0.0
          %v878 = vmax.f32 %v862, 0.0
          %v879 = vmax.f32 %v863, 0.0
          %v880 = vmax.f32 %v864, 0.0
          %v881 = vmax.f32 %v865, 0.0
          %v882 = vmax.f32 %v866, 0.0
          %v883 = vmax.f32 %v867, 0.0
          %v884 = vmax.f32 %v868, 0.0
          %v885 = vmax.f32 %v869, 0.0
          %v886 = vmax.f32 %v870, 0.0
          %v887 = vmax.f32 %v871, 0.0
          %v888 = vmax.f32 %v872, 0.0
          %v889 = vld [vmem:[%s12] sm:$0x1]
          %v891 = vperm.slane %v889, 0
          %v893 = vmul.f32 %v873, %v891
          %v894 = vmul.f32 %v874, %v891
          %v895 = vmul.f32 %v875, %v891
          %v896 = vmul.f32 %v876, %v891
          %v897 = vmul.f32 %v877, %v891
          %v898 = vmul.f32 %v878, %v891
          %v899 = vmul.f32 %v879, %v891
          %v900 = vmul.f32 %v880, %v891
          %v901 = vmul.f32 %v881, %v891
          %v902 = vmul.f32 %v882, %v891
          %v903 = vmul.f32 %v883, %v891
          %v904 = vmul.f32 %v884, %v891
          %v905 = vmul.f32 %v885, %v891
          %v906 = vmul.f32 %v886, %v891
          %v907 = vmul.f32 %v887, %v891
          %v908 = vmul.f32 %v888, %v891
          %909 = vadd.xlane.f32.xlu0 %v893
          %v910 = vpop.xlane.xlu0 %909
          %911 = vadd.xlane.f32.xlu0 %v894
          %v912 = vpop.xlane.xlu0 %911
          %913 = vadd.xlane.f32.xlu0 %v895
          %v914 = vpop.xlane.xlu0 %913
          %915 = vadd.xlane.f32.xlu0 %v896
          %v916 = vpop.xlane.xlu0 %915
          %917 = vadd.xlane.f32.xlu0 %v897
          %v918 = vpop.xlane.xlu0 %917
          %919 = vadd.xlane.f32.xlu0 %v898
          %v920 = vpop.xlane.xlu0 %919
          %921 = vadd.xlane.f32.xlu0 %v899
          %v922 = vpop.xlane.xlu0 %921
          %923 = vadd.xlane.f32.xlu0 %v900
          %v924 = vpop.xlane.xlu0 %923
          %925 = vadd.xlane.f32.xlu0 %v901
          %v926 = vpop.xlane.xlu0 %925
          %927 = vadd.xlane.f32.xlu0 %v902
          %v928 = vpop.xlane.xlu0 %927
          %929 = vadd.xlane.f32.xlu0 %v903
          %v930 = vpop.xlane.xlu0 %929
          %931 = vadd.xlane.f32.xlu0 %v904
          %v932 = vpop.xlane.xlu0 %931
          %933 = vadd.xlane.f32.xlu0 %v905
          %v934 = vpop.xlane.xlu0 %933
          %935 = vadd.xlane.f32.xlu0 %v906
          %v936 = vpop.xlane.xlu0 %935
          %937 = vadd.xlane.f32.xlu0 %v907
          %v938 = vpop.xlane.xlu0 %937
          %939 = vadd.xlane.f32.xlu0 %v908
          %v940 = vpop.xlane.xlu0 %939
          %v941 = vxor.u32 %v910, 2147483648
          %v942 = vxor.u32 %v912, 2147483648
          %v943 = vxor.u32 %v914, 2147483648
          %v944 = vxor.u32 %v916, 2147483648
          %v945 = vxor.u32 %v918, 2147483648
          %v946 = vxor.u32 %v920, 2147483648
          %v947 = vxor.u32 %v922, 2147483648
          %v948 = vxor.u32 %v924, 2147483648
          %v949 = vxor.u32 %v926, 2147483648
          %v950 = vxor.u32 %v928, 2147483648
          %v951 = vxor.u32 %v930, 2147483648
          %v952 = vxor.u32 %v932, 2147483648
          %v953 = vxor.u32 %v934, 2147483648
          %v954 = vxor.u32 %v936, 2147483648
          %v955 = vxor.u32 %v938, 2147483648
          %v956 = vxor.u32 %v940, 2147483648
          %v957 = vmul.f32 %v941, 1.442695
          %v958 = vpow.pop %v957
          %v959 = vmul.f32 %v942, 1.442695
          %v960 = vpow.pop %v959
          %v961 = vmul.f32 %v943, 1.442695
          %v962 = vpow.pop %v961
          %v963 = vmul.f32 %v944, 1.442695
          %v964 = vpow.pop %v963
          %v965 = vmul.f32 %v945, 1.442695
          %v966 = vpow.pop %v965
          %v967 = vmul.f32 %v946, 1.442695
          %v968 = vpow.pop %v967
          %v969 = vmul.f32 %v947, 1.442695
          %v970 = vpow.pop %v969
          %v971 = vmul.f32 %v948, 1.442695
          %v972 = vpow.pop %v971
          %v973 = vmul.f32 %v949, 1.442695
          %v974 = vpow.pop %v973
          %v975 = vmul.f32 %v950, 1.442695
          %v976 = vpow.pop %v975
          %v977 = vmul.f32 %v951, 1.442695
          %v978 = vpow.pop %v977
          %v979 = vmul.f32 %v952, 1.442695
          %v980 = vpow.pop %v979
          %v981 = vmul.f32 %v953, 1.442695
          %v982 = vpow.pop %v981
          %v983 = vmul.f32 %v954, 1.442695
          %v984 = vpow.pop %v983
          %v985 = vmul.f32 %v955, 1.442695
          %v986 = vpow.pop %v985
          %v987 = vmul.f32 %v956, 1.442695
          %v988 = vpow.pop %v987
          %v989 = vadd.f32 %v958, 1.0
          %v990 = vadd.f32 %v960, 1.0
          %v991 = vadd.f32 %v962, 1.0
          %v992 = vadd.f32 %v964, 1.0
          %v993 = vadd.f32 %v966, 1.0
          %v994 = vadd.f32 %v968, 1.0
          %v995 = vadd.f32 %v970, 1.0
          %v996 = vadd.f32 %v972, 1.0
          %v997 = vadd.f32 %v974, 1.0
          %v998 = vadd.f32 %v976, 1.0
          %v999 = vadd.f32 %v978, 1.0
          %v1000 = vadd.f32 %v980, 1.0
          %v1001 = vadd.f32 %v982, 1.0
          %v1002 = vadd.f32 %v984, 1.0
          %v1003 = vadd.f32 %v986, 1.0
          %v1004 = vadd.f32 %v988, 1.0
          %v1005 = vrcp.pop %v989
          %v1006 = vmul.f32 %v989, %v1005
          %v1007 = vsub.f32 1.0, %v1006
          %v1008 = vmul.f32 %v1005, %v1007
          %v1009 = vadd.f32 %v1005, %v1008
          %vm1010 = vweird.f32 %v989
          %vm1011 = vweird.f32 %v1005
          %vm1012 = vmor %vm1010, %vm1011
          %v1013 = vsel %vm1012, %v1005, %v1009
          %v1014 = vand.u32 2147483647, %v989
          %vm1015 = vcmp.eq.f32.partialorder %v1014, 8.507059e+37
          %v1016 = vand.u32 %v989, 2147483648
          %v1017 = vor.u32 1.1754944e-38, %v1016
          %v1018 = vsel %vm1015, %v1017, %v1013
          %v1019 = vmul.f32 1.0, %v1018
          %v1020 = vrcp.pop %v990
          %v1021 = vmul.f32 %v990, %v1020
          %v1022 = vsub.f32 1.0, %v1021
          %v1023 = vmul.f32 %v1020, %v1022
          %v1024 = vadd.f32 %v1020, %v1023
          %vm1025 = vweird.f32 %v990
          %vm1026 = vweird.f32 %v1020
          %vm1027 = vmor %vm1025, %vm1026
          %v1028 = vsel %vm1027, %v1020, %v1024
          %v1029 = vand.u32 2147483647, %v990
          %vm1030 = vcmp.eq.f32.partialorder %v1029, 8.507059e+37
          %v1031 = vand.u32 %v990, 2147483648
          %v1032 = vor.u32 1.1754944e-38, %v1031
          %v1033 = vsel %vm1030, %v1032, %v1028
          %v1034 = vmul.f32 1.0, %v1033
          %v1035 = vrcp.pop %v991
          %v1036 = vmul.f32 %v991, %v1035
          %v1037 = vsub.f32 1.0, %v1036
          %v1038 = vmul.f32 %v1035, %v1037
          %v1039 = vadd.f32 %v1035, %v1038
          %vm1040 = vweird.f32 %v991
          %vm1041 = vweird.f32 %v1035
          %vm1042 = vmor %vm1040, %vm1041
          %v1043 = vsel %vm1042, %v1035, %v1039
          %v1044 = vand.u32 2147483647, %v991
          %vm1045 = vcmp.eq.f32.partialorder %v1044, 8.507059e+37
          %v1046 = vand.u32 %v991, 2147483648
          %v1047 = vor.u32 1.1754944e-38, %v1046
          %v1048 = vsel %vm1045, %v1047, %v1043
          %v1049 = vmul.f32 1.0, %v1048
          %v1050 = vrcp.pop %v992
          %v1051 = vmul.f32 %v992, %v1050
          %v1052 = vsub.f32 1.0, %v1051
          %v1053 = vmul.f32 %v1050, %v1052
          %v1054 = vadd.f32 %v1050, %v1053
          %vm1055 = vweird.f32 %v992
          %vm1056 = vweird.f32 %v1050
          %vm1057 = vmor %vm1055, %vm1056
          %v1058 = vsel %vm1057, %v1050, %v1054
          %v1059 = vand.u32 2147483647, %v992
          %vm1060 = vcmp.eq.f32.partialorder %v1059, 8.507059e+37
          %v1061 = vand.u32 %v992, 2147483648
          %v1062 = vor.u32 1.1754944e-38, %v1061
          %v1063 = vsel %vm1060, %v1062, %v1058
          %v1064 = vmul.f32 1.0, %v1063
          %v1065 = vrcp.pop %v993
          %v1066 = vmul.f32 %v993, %v1065
          %v1067 = vsub.f32 1.0, %v1066
          %v1068 = vmul.f32 %v1065, %v1067
          %v1069 = vadd.f32 %v1065, %v1068
          %vm1070 = vweird.f32 %v993
          %vm1071 = vweird.f32 %v1065
          %vm1072 = vmor %vm1070, %vm1071
          %v1073 = vsel %vm1072, %v1065, %v1069
          %v1074 = vand.u32 2147483647, %v993
          %vm1075 = vcmp.eq.f32.partialorder %v1074, 8.507059e+37
          %v1076 = vand.u32 %v993, 2147483648
          %v1077 = vor.u32 1.1754944e-38, %v1076
          %v1078 = vsel %vm1075, %v1077, %v1073
          %v1079 = vmul.f32 1.0, %v1078
          %v1080 = vrcp.pop %v994
          %v1081 = vmul.f32 %v994, %v1080
          %v1082 = vsub.f32 1.0, %v1081
          %v1083 = vmul.f32 %v1080, %v1082
          %v1084 = vadd.f32 %v1080, %v1083
          %vm1085 = vweird.f32 %v994
          %vm1086 = vweird.f32 %v1080
          %vm1087 = vmor %vm1085, %vm1086
          %v1088 = vsel %vm1087, %v1080, %v1084
          %v1089 = vand.u32 2147483647, %v994
          %vm1090 = vcmp.eq.f32.partialorder %v1089, 8.507059e+37
          %v1091 = vand.u32 %v994, 2147483648
          %v1092 = vor.u32 1.1754944e-38, %v1091
          %v1093 = vsel %vm1090, %v1092, %v1088
          %v1094 = vmul.f32 1.0, %v1093
          %v1095 = vrcp.pop %v995
          %v1096 = vmul.f32 %v995, %v1095
          %v1097 = vsub.f32 1.0, %v1096
          %v1098 = vmul.f32 %v1095, %v1097
          %v1099 = vadd.f32 %v1095, %v1098
          %vm1100 = vweird.f32 %v995
          %vm1101 = vweird.f32 %v1095
          %vm1102 = vmor %vm1100, %vm1101
          %v1103 = vsel %vm1102, %v1095, %v1099
          %v1104 = vand.u32 2147483647, %v995
          %vm1105 = vcmp.eq.f32.partialorder %v1104, 8.507059e+37
          %v1106 = vand.u32 %v995, 2147483648
          %v1107 = vor.u32 1.1754944e-38, %v1106
          %v1108 = vsel %vm1105, %v1107, %v1103
          %v1109 = vmul.f32 1.0, %v1108
          %v1110 = vrcp.pop %v996
          %v1111 = vmul.f32 %v996, %v1110
          %v1112 = vsub.f32 1.0, %v1111
          %v1113 = vmul.f32 %v1110, %v1112
          %v1114 = vadd.f32 %v1110, %v1113
          %vm1115 = vweird.f32 %v996
          %vm1116 = vweird.f32 %v1110
          %vm1117 = vmor %vm1115, %vm1116
          %v1118 = vsel %vm1117, %v1110, %v1114
          %v1119 = vand.u32 2147483647, %v996
          %vm1120 = vcmp.eq.f32.partialorder %v1119, 8.507059e+37
          %v1121 = vand.u32 %v996, 2147483648
          %v1122 = vor.u32 1.1754944e-38, %v1121
          %v1123 = vsel %vm1120, %v1122, %v1118
          %v1124 = vmul.f32 1.0, %v1123
          %v1125 = vrcp.pop %v997
          %v1126 = vmul.f32 %v997, %v1125
          %v1127 = vsub.f32 1.0, %v1126
          %v1128 = vmul.f32 %v1125, %v1127
          %v1129 = vadd.f32 %v1125, %v1128
          %vm1130 = vweird.f32 %v997
          %vm1131 = vweird.f32 %v1125
          %vm1132 = vmor %vm1130, %vm1131
          %v1133 = vsel %vm1132, %v1125, %v1129
          %v1134 = vand.u32 2147483647, %v997
          %vm1135 = vcmp.eq.f32.partialorder %v1134, 8.507059e+37
          %v1136 = vand.u32 %v997, 2147483648
          %v1137 = vor.u32 1.1754944e-38, %v1136
          %v1138 = vsel %vm1135, %v1137, %v1133
          %v1139 = vmul.f32 1.0, %v1138
          %v1140 = vrcp.pop %v998
          %v1141 = vmul.f32 %v998, %v1140
          %v1142 = vsub.f32 1.0, %v1141
          %v1143 = vmul.f32 %v1140, %v1142
          %v1144 = vadd.f32 %v1140, %v1143
          %vm1145 = vweird.f32 %v998
          %vm1146 = vweird.f32 %v1140
          %vm1147 = vmor %vm1145, %vm1146
          %v1148 = vsel %vm1147, %v1140, %v1144
          %v1149 = vand.u32 2147483647, %v998
          %vm1150 = vcmp.eq.f32.partialorder %v1149, 8.507059e+37
          %v1151 = vand.u32 %v998, 2147483648
          %v1152 = vor.u32 1.1754944e-38, %v1151
          %v1153 = vsel %vm1150, %v1152, %v1148
          %v1154 = vmul.f32 1.0, %v1153
          %v1155 = vrcp.pop %v999
          %v1156 = vmul.f32 %v999, %v1155
          %v1157 = vsub.f32 1.0, %v1156
          %v1158 = vmul.f32 %v1155, %v1157
          %v1159 = vadd.f32 %v1155, %v1158
          %vm1160 = vweird.f32 %v999
          %vm1161 = vweird.f32 %v1155
          %vm1162 = vmor %vm1160, %vm1161
          %v1163 = vsel %vm1162, %v1155, %v1159
          %v1164 = vand.u32 2147483647, %v999
          %vm1165 = vcmp.eq.f32.partialorder %v1164, 8.507059e+37
          %v1166 = vand.u32 %v999, 2147483648
          %v1167 = vor.u32 1.1754944e-38, %v1166
          %v1168 = vsel %vm1165, %v1167, %v1163
          %v1169 = vmul.f32 1.0, %v1168
          %v1170 = vrcp.pop %v1000
          %v1171 = vmul.f32 %v1000, %v1170
          %v1172 = vsub.f32 1.0, %v1171
          %v1173 = vmul.f32 %v1170, %v1172
          %v1174 = vadd.f32 %v1170, %v1173
          %vm1175 = vweird.f32 %v1000
          %vm1176 = vweird.f32 %v1170
          %vm1177 = vmor %vm1175, %vm1176
          %v1178 = vsel %vm1177, %v1170, %v1174
          %v1179 = vand.u32 2147483647, %v1000
          %vm1180 = vcmp.eq.f32.partialorder %v1179, 8.507059e+37
          %v1181 = vand.u32 %v1000, 2147483648
          %v1182 = vor.u32 1.1754944e-38, %v1181
          %v1183 = vsel %vm1180, %v1182, %v1178
          %v1184 = vmul.f32 1.0, %v1183
          %v1185 = vrcp.pop %v1001
          %v1186 = vmul.f32 %v1001, %v1185
          %v1187 = vsub.f32 1.0, %v1186
          %v1188 = vmul.f32 %v1185, %v1187
          %v1189 = vadd.f32 %v1185, %v1188
          %vm1190 = vweird.f32 %v1001
          %vm1191 = vweird.f32 %v1185
          %vm1192 = vmor %vm1190, %vm1191
          %v1193 = vsel %vm1192, %v1185, %v1189
          %v1194 = vand.u32 2147483647, %v1001
          %vm1195 = vcmp.eq.f32.partialorder %v1194, 8.507059e+37
          %v1196 = vand.u32 %v1001, 2147483648
          %v1197 = vor.u32 1.1754944e-38, %v1196
          %v1198 = vsel %vm1195, %v1197, %v1193
          %v1199 = vmul.f32 1.0, %v1198
          %v1200 = vrcp.pop %v1002
          %v1201 = vmul.f32 %v1002, %v1200
          %v1202 = vsub.f32 1.0, %v1201
          %v1203 = vmul.f32 %v1200, %v1202
          %v1204 = vadd.f32 %v1200, %v1203
          %vm1205 = vweird.f32 %v1002
          %vm1206 = vweird.f32 %v1200
          %vm1207 = vmor %vm1205, %vm1206
          %v1208 = vsel %vm1207, %v1200, %v1204
          %v1209 = vand.u32 2147483647, %v1002
          %vm1210 = vcmp.eq.f32.partialorder %v1209, 8.507059e+37
          %v1211 = vand.u32 %v1002, 2147483648
          %v1212 = vor.u32 1.1754944e-38, %v1211
          %v1213 = vsel %vm1210, %v1212, %v1208
          %v1214 = vmul.f32 1.0, %v1213
          %v1215 = vrcp.pop %v1003
          %v1216 = vmul.f32 %v1003, %v1215
          %v1217 = vsub.f32 1.0, %v1216
          %v1218 = vmul.f32 %v1215, %v1217
          %v1219 = vadd.f32 %v1215, %v1218
          %vm1220 = vweird.f32 %v1003
          %vm1221 = vweird.f32 %v1215
          %vm1222 = vmor %vm1220, %vm1221
          %v1223 = vsel %vm1222, %v1215, %v1219
          %v1224 = vand.u32 2147483647, %v1003
          %vm1225 = vcmp.eq.f32.partialorder %v1224, 8.507059e+37
          %v1226 = vand.u32 %v1003, 2147483648
          %v1227 = vor.u32 1.1754944e-38, %v1226
          %v1228 = vsel %vm1225, %v1227, %v1223
          %v1229 = vmul.f32 1.0, %v1228
          %v1230 = vrcp.pop %v1004
          %v1231 = vmul.f32 %v1004, %v1230
          %v1232 = vsub.f32 1.0, %v1231
          %v1233 = vmul.f32 %v1230, %v1232
          %v1234 = vadd.f32 %v1230, %v1233
          %vm1235 = vweird.f32 %v1004
          %vm1236 = vweird.f32 %v1230
          %vm1237 = vmor %vm1235, %vm1236
          %v1238 = vsel %vm1237, %v1230, %v1234
          %v1239 = vand.u32 2147483647, %v1004
          %vm1240 = vcmp.eq.f32.partialorder %v1239, 8.507059e+37
          %v1241 = vand.u32 %v1004, 2147483648
          %v1242 = vor.u32 1.1754944e-38, %v1241
          %v1243 = vsel %vm1240, %v1242, %v1238
          %v1244 = vmul.f32 1.0, %v1243
          %v1245 = vadd.f32 %v468, %v484
          %v1246 = vadd.f32 %v469, %v485
          %v1247 = vadd.f32 %v470, %v486
          %v1248 = vadd.f32 %v471, %v487
          %v1249 = vadd.f32 %v472, %v488
          %v1250 = vadd.f32 %v473, %v489
          %v1251 = vadd.f32 %v474, %v490
          %v1252 = vadd.f32 %v475, %v491
          %v1253 = vadd.f32 %v476, %v492
          %v1254 = vadd.f32 %v477, %v493
          %v1255 = vadd.f32 %v478, %v494
          %v1256 = vadd.f32 %v479, %v495
          %v1257 = vadd.f32 %v480, %v496
          %v1258 = vadd.f32 %v481, %v497
          %v1259 = vadd.f32 %v482, %v498
          %v1260 = vadd.f32 %v483, %v499
          %v1261 = vmul.f32 %v1019, %v1245
          %v1262 = vmul.f32 %v1034, %v1246
          %v1263 = vmul.f32 %v1049, %v1247
          %v1264 = vmul.f32 %v1064, %v1248
          %v1265 = vmul.f32 %v1079, %v1249
          %v1266 = vmul.f32 %v1094, %v1250
          %v1267 = vmul.f32 %v1109, %v1251
          %v1268 = vmul.f32 %v1124, %v1252
          %v1269 = vmul.f32 %v1139, %v1253
          %v1270 = vmul.f32 %v1154, %v1254
          %v1271 = vmul.f32 %v1169, %v1255
          %v1272 = vmul.f32 %v1184, %v1256
          %v1273 = vmul.f32 %v1199, %v1257
          %v1274 = vmul.f32 %v1214, %v1258
          %v1275 = vmul.f32 %v1229, %v1259
          %v1276 = vmul.f32 %v1244, %v1260
          %s1277 = sld [smem:[#allocation4 + %s56]]
          %s1278 = smul.u32 %s1277, 16
          %v1279 = vlaneseq
          %v1280 = vshrl.u32 %v1279, 7
          %v1281 = vadd.s32 %v1280, 8
          %v1282 = vstv %s1278
          %v1283 = vadd.s32 %v1282, %v1280
          %v1284 = vadd.s32 %v1282, %v1281
          %v1285 = vld [vmem:[%s452] sm:$0x1]
          %v1286 = vperm.slane %v1285, 0
          %vm1287 = vcmp.eq.s32.totalorder %v1283, %v1286
          %vm1288 = vcmp.eq.s32.totalorder %v1284, %v1286
          %v1289 = vsel %vm1287, 1, 0
          %v1290 = vsel %vm1288, 1, 0
          %v1291 = vcvt.s32.f32 %v1289
          %v1292 = vcvt.s32.f32 %v1290
          %v1293 = vld [vmem:[#allocation2] sm:$0xff]
          %v1294 = vld [vmem:[#allocation2 + $0x8] sm:$0xff]
          %1295 = vmatpush.msra.mxu0 %v1276
          %1296 = vmatpush.msra.mxu0 %v1275
          %1297 = vmatpush.msra.mxu0 %v1274
          %1298 = vmatpush.msra.mxu0 %v1273
          %1299 = vmatpush.msra.mxu0 %v1272
          %1300 = vmatpush.msra.mxu0 %v1271
          %1301 = vmatpush.msra.mxu0 %v1270
          %1302 = vmatpush.msra.mxu0 %v1269
          %1303 = vmatpush.msra.mxu0 %v1268
          %1304 = vmatpush.msra.mxu0 %v1267
          %1305 = vmatpush.msra.mxu0 %v1266
          %1306 = vmatpush.msra.mxu0 %v1265
          %1307 = vmatpush.msra.mxu0 %v1264
          %1308 = vmatpush.msra.mxu0 %v1263
          %1309 = vmatpush.msra.mxu0 %v1262
          %1310 = vmatpush.msra.mxu0 %v1261
          %1311 = vmatmul.f32.gmra.mxu0 %v1291
          %v1312 = vpop.f32.mrf.mxu0
          %v1313 = vadd.f32 0.0, %v1312
          %1314 = vmatmul.f32.gmra.mxu0 %v1292
          %v1315 = vpop.f32.mrf.mxu0
          %v1316 = vadd.f32 0.0, %v1315
          %1317 = vdwg.mxu0
          %v1318 = vadd.f32 %v1293, %v1313
          %v1319 = vadd.f32 %v1294, %v1316
          %1320 = vst [vmem:[#allocation2] sm:$0xff] %v1318
          %1321 = vst [vmem:[#allocation2 + $0x8] sm:$0xff] %v1319
        $region64: #{gnn_layer_forward.1} parent=55 // pred_fallthru
          _
        %s1322 = sld [smem:[#allocation7 + %s56]]
        %p1323 = scmp.eq.s32.totalorder %s1322, 1
        // Predicated region
        $region65: #{gnn_layer_forward.1} parent=55 // pred_check
          %p1324 = pneg %p1323
        $region66: #{gnn_layer_forward.1} parent=55 // pred_check_branch
          %1326 = sbr.rel (%p1324) target = $region68
        $region67: #{gnn_layer_forward.1} parent=55 // pred_region
          %v1327 = vld [vmem:[#allocation2] sm:$0xff]
          %v1328 = vld [vmem:[#allocation2 + $0x8] sm:$0xff]
          %v1329 = vld [vmem:[%s13] sm:$0xff]
          %v1330 = vld [vmem:[%s13 + $0x8] sm:$0xff]
          %v1331 = vld [vmem:[%s13 + $0x10] sm:$0xff]
          %v1332 = vld [vmem:[%s13 + $0x18] sm:$0xff]
          %v1333 = vld [vmem:[%s13 + $0x20] sm:$0xff]
          %v1334 = vld [vmem:[%s13 + $0x28] sm:$0xff]
          %v1335 = vld [vmem:[%s13 + $0x30] sm:$0xff]
          %v1336 = vld [vmem:[%s13 + $0x38] sm:$0xff]
          %v1337 = vld [vmem:[%s13 + $0x40] sm:$0xff]
          %v1338 = vld [vmem:[%s13 + $0x48] sm:$0xff]
          %v1339 = vld [vmem:[%s13 + $0x50] sm:$0xff]
          %v1340 = vld [vmem:[%s13 + $0x58] sm:$0xff]
          %v1341 = vld [vmem:[%s13 + $0x60] sm:$0xff]
          %v1342 = vld [vmem:[%s13 + $0x68] sm:$0xff]
          %v1343 = vld [vmem:[%s13 + $0x70] sm:$0xff]
          %v1344 = vld [vmem:[%s13 + $0x78] sm:$0xff]
          %1345 = vmatpush.msra.mxu0 %v1344
          %1346 = vmatpush.msra.mxu0 %v1343
          %1347 = vmatpush.msra.mxu0 %v1342
          %1348 = vmatpush.msra.mxu0 %v1341
          %1349 = vmatpush.msra.mxu0 %v1340
          %1350 = vmatpush.msra.mxu0 %v1339
          %1351 = vmatpush.msra.mxu0 %v1338
          %1352 = vmatpush.msra.mxu0 %v1337
          %1353 = vmatpush.msra.mxu0 %v1336
          %1354 = vmatpush.msra.mxu0 %v1335
          %1355 = vmatpush.msra.mxu0 %v1334
          %1356 = vmatpush.msra.mxu0 %v1333
          %1357 = vmatpush.msra.mxu0 %v1332
          %1358 = vmatpush.msra.mxu0 %v1331
          %1359 = vmatpush.msra.mxu0 %v1330
          %1360 = vmatpush.msra.mxu0 %v1329
          %1361 = vmatmul.f32.gmra.mxu0 %v1327
          %v1362 = vpop.f32.mrf.mxu0
          %v1363 = vadd.f32 0.0, %v1362
          %1364 = vmatmul.f32.gmra.mxu0 %v1328
          %v1365 = vpop.f32.mrf.mxu0
          %v1366 = vadd.f32 0.0, %v1365
          %1367 = vdwg.mxu0
          %1368 = vst [vmem:[%s424] sm:$0xff] %v1363
          %1369 = vst [vmem:[%s424 + $0x8] sm:$0xff] %v1366
        $region68: #{gnn_layer_forward.1} parent=55 // pred_fallthru
          _
        %s1370 = sand.u32 %s283, 1
        %s1371 = scalar_lea.sflag [#allocation10], %s1370
        %s1372 = sand.u32 %s283, 1
        %s1373 = smul.addr %s1372, 16
        %s1374 = scalar_lea.vmem [#allocation9], %s1373
        // Predicated region
        $region69: #{gnn_layer_forward.1} parent=55 // pred_check
          %p1375 = pneg %p293
        $region70: #{gnn_layer_forward.1} parent=55 // pred_check_branch
          %1377 = sbr.rel (%p1375) target = $region72
        $region71: #{gnn_layer_forward.1} parent=55 // pred_region
          %s1378 = sld [smem:[#allocation4 + %s56]]
          %s1379 = smul.u32 2, %s1378
          %1381 = vsyncadd %s1371, 0
          %s1382 = smul.addr %s1379, 8
          %s1383 = scalar_lea.hbm %s14, %s1382
          %s1384 = sshll.u32 %s1374, 4
          %s1385 = int_to_ptr.vmem [resolvable:$true] %s1384
          %s1386 = sshll.u32 %s1383, 4
          %s1387 = int_to_ptr.hbm [resolvable:$true] %s1386
          %1392 = dma.vmem_to_hbm [thread:$0]  %s1385, 256, %s1387, %s1371, 128, 128, 8
        $region72: #{gnn_layer_forward.1} parent=55 // pred_fallthru
          _
      $region56: #{gnn_layer_forward.1} parent=5 // pred_fallthru
        _
      %p1393 = scmp.le.s32.totalorder 2, %s51
      // Predicated region
      $region73: #{gnn_layer_forward.1} parent=5 // pred_check
        %p1394 = pneg %p1393
      $region74: #{gnn_layer_forward.1} parent=5 // pred_check_branch
        %1396 = sbr.rel (%p1394) target = $region76
      $region75: #{gnn_layer_forward.1} parent=5 // pred_region
        %s1397 = ssub.s32 %s51, 2
        // Predicated region
        $region77: #{gnn_layer_forward.1} parent=75 // pred_check
          %p1398 = pneg %p299
        $region78: #{gnn_layer_forward.1} parent=75 // pred_check_branch
          %1400 = sbr.rel (%p1398) target = $region80
        $region79: #{gnn_layer_forward.1} parent=75 // pred_region
          %s1401 = sand.u32 %s284, 1
          %s1402 = scalar_lea.sflag [#allocation10], %s1401
          %s1403 = sand.u32 %s284, 1
          %s1404 = smul.addr %s1403, 16
          %s1405 = scalar_lea.vmem [#allocation9], %s1404
          %1407 = dma.done %s1402, 256
        $region80: #{gnn_layer_forward.1} parent=75 // pred_fallthru
          _
      $region76: #{gnn_layer_forward.1} parent=5 // pred_fallthru
        _
    $region6: #{gnn_layer_forward.1} parent=1 // loop_footer
      %s55 = sadd.s32 1, %s51
    $region7: #{gnn_layer_forward.1} parent=1 // loop_footer_branch
      %50 = sbr.rel target = $region3
    $region8: #{gnn_layer_forward.1} parent=1 // loop_exit
      _
    %1408 = vsyncpa [#allocation10], 1
    %s1409 = scalar_lea.sflag [#allocation10], 1
    %1410 = vsyncpa %s1409, 1

</llo_original>
